<compile_context>
chip_gen: v5e
topology: v5e:2x2
jax: 0.10.0
libtpu: 0.0.40
codegen_flags: <defaults>
</compile_context>

<pallas_src>
import numpy as np
import jax
import jax.numpy as jnp
from jax import lax
from jax.experimental import pallas as pl
from jax.experimental.pallas import tpu as pltpu

# --- SMALL stand-in sizes (real model: downsample 32, feat_dim 1024, image 1120x896) ---
PATCH = 16        # stand-in backbone total downsample factor
FEAT_DIM = 128    # stand-in feature dim (swin_base would be 1024)
POOL = 7          # nn.AvgPool2d(7, stride=7)
TM = 512          # embed row tile; use 1024 on v5e/v6e (128 MiB VMEM)


# ---------------------------------------------------------------------------
# Kernel 1: stand-in patch backbone (linear patch-embed + LayerNorm), M-tiled.
# TODO(synk): the timm `swin_base_patch4_window7_224` backbone (forward_features)
# is a full pretrained transformer with no clean Pallas equivalent; it is stood in
# by a single Pallas patch-embedding matmul + LayerNorm producing an NHWC feature
# map with the same downsample-factor / channels-last semantics.
# ---------------------------------------------------------------------------
def embed_kernel(p_ref, w_ref, b_ref, g_ref, beta_ref, o_ref):
    # bf16 MXU matmul with f32 accumulation (inputs already bf16 -> no in-kernel pack ops).
    y = jnp.dot(p_ref[...], w_ref[...], preferred_element_type=jnp.float32)
    y = y + b_ref[...]
    # Fused LayerNorm statistics: sum and sum-of-squares are independent reductions
    # (var = E[x^2] - mu^2), halving the sequential XLU work per tile.
    inv_c = 1.0 / y.shape[-1]
    s1 = jnp.sum(y, axis=-1, keepdims=True)
    s2 = jnp.sum(y * y, axis=-1, keepdims=True)
    mu = s1 * inv_c
    var = s2 * inv_c - mu * mu
    y = (y - mu) * lax.rsqrt(var + 1e-5)
    # LN math stays f32; cast only on the store (bf16 writeback halves HBM traffic).
    o_ref[...] = (y * g_ref[...] + beta_ref[...]).astype(o_ref.dtype)


def patch_backbone(patches, w_bf16, b, gamma, beta):
    """patches: (M, K) bf16 im2col rows.  Returns (M, C) bf16 features."""
    M, K = patches.shape
    C = w_bf16.shape[1]
    assert K % 128 == 0 and C % 128 == 0
    # Fixed large tile + cdiv grid: Pallas masks the ragged last block, so no divisor
    # constraint collapses the tile at realistic M (e.g. B*980 for 1120x896 @ ds32).
    tm = TM if M >= TM else M            # tm % 8 == 0 when tiled; tm == M (full dim) otherwise
    return pl.pallas_call(
        embed_kernel,
        out_shape=jax.ShapeDtypeStruct((M, C), jnp.bfloat16),
        grid=(pl.cdiv(M, tm),),
        in_specs=[
            # Patch tile streams over M (software-pipelined, double-buffered).
            pl.BlockSpec((tm, K), lambda i: (i, 0)),
            # Resident operands (constant index_map). On v7x add pipeline_mode=pl.Buffered(1)
            # to drop their second buffer and free VMEM headroom for larger patch tiles.
            pl.BlockSpec((K, C), lambda i: (0, 0)),   # bf16 weight
            pl.BlockSpec((1, C), lambda i: (0, 0)),   # bias
            pl.BlockSpec((1, C), lambda i: (0, 0)),   # LN gamma
            pl.BlockSpec((1, C), lambda i: (0, 0)),   # LN beta
        ],
        out_specs=pl.BlockSpec((tm, C), lambda i: (i, 0)),
        compiler_params=pltpu.CompilerParams(
            dimension_semantics=("parallel",),        # shard M-tiles across TensorCores
            vmem_limit_bytes=48 << 20),               # v7x-safe; raise toward 96 MiB on v5e/v6e
    )(patches, w_bf16, b, gamma, beta)


# ---------------------------------------------------------------------------
# Kernel 2: AvgPool2d(7,7) + PatchFusionAttention, fused, one grid step per batch image.
# Pooling is a single bf16 (T, Hf*Wf) x (Hf*Wf, C) MXU matmul; tokens stay live in vregs.
# ---------------------------------------------------------------------------
def fusion_kernel(pool_ref, feat_ref, fcw_ref, fcb_ref, ffw_ref, ffb_ref, out_ref):
    T = pool_ref.shape[0]

    # ---- AvgPool2d(7, stride=7): bf16 0/1 summation matmul, then exact 1/49 scale in f32 ----
    feat2d = feat_ref[0]                                              # (Hf*Wf, C) bf16
    tokens = jnp.dot(pool_ref[...], feat2d,
                     preferred_element_type=jnp.float32)              # (T, C) f32
    tokens = tokens * (1.0 / (POOL * POOL))

    # ---- cosine-normalized tokens (eps-guarded rsqrt) ----
    sumsq = jnp.sum(tokens * tokens, axis=-1, keepdims=True)
    tnorm = tokens * lax.rsqrt(sumsq + 1e-12)                         # (T, C)

    # ---- cancer prob per token: softmax(fc(tokens))[..., 1], computed transposed, f32 ----
    logitsT = lax.dot_general(fcw_ref[...], tokens,
                              (((1,), (1,)), ((), ())),
                              preferred_element_type=jnp.float32)     # (2, T)
    l0 = logitsT[0:1, :] + fcb_ref[0]                                 # biases live in SMEM
    l1 = logitsT[1:2, :] + fcb_ref[1]
    m = jnp.maximum(l0, l1)
    e0 = jnp.exp(l0 - m)
    e1 = jnp.exp(l1 - m)
    cp_row = e1 / (e0 + e1)                                           # (1, T) prob of class 1

    # ---- first-occurrence argmax over tokens, kept as a one-hot row (all f32) ----
    ids = lax.broadcasted_iota(jnp.int32, (1, T), 1)
    maxv = jnp.max(cp_row, axis=-1, keepdims=True)
    first = jnp.min(jnp.where(cp_row == maxv, ids, T), axis=-1, keepdims=True)
    onehot = (ids == first).astype(jnp.float32)                       # (1, T)

    # ---- selected row of softmax(cosine attention) (only that row is needed) ----
    sel_tnorm = jnp.dot(onehot, tnorm, preferred_element_type=jnp.float32)   # (1, C)
    attn_logits = lax.dot_general(sel_tnorm, tnorm,
                                  (((1,), (1,)), ((), ())),
                                  preferred_element_type=jnp.float32)        # (1, T)
    am = jnp.max(attn_logits, axis=-1, keepdims=True)
    ae = jnp.exp(attn_logits - am)
    attn_row = ae / jnp.sum(ae, axis=-1, keepdims=True)

    # ---- weight tokens, renormalize, fuse, final linear ----
    w_row = attn_row * cp_row
    w_row = w_row / jnp.sum(w_row, axis=-1, keepdims=True)
    x_fused = jnp.dot(w_row, tokens, preferred_element_type=jnp.float32)     # (1, C)
    out2 = lax.dot_general(x_fused, ffw_ref[...],
                           (((1,), (1,)), ((), ())),
                           preferred_element_type=jnp.float32)               # (1, 2)
    out_ref[0] = out2 + ffb_ref[...]


def _make_pool_matrix(Hf, Wf, pool=POOL):
    """(T, Hf*Wf) 0/1 summation matrix (bf16-exact) for AvgPool2d(pool, stride=pool)."""
    Ht, Wt = Hf // pool, Wf // pool
    T = Ht * Wt
    m = np.zeros((T, Hf * Wf), np.float32)
    for ti in range(Ht):
        for tj in range(Wt):
            r = ti * Wt + tj
            for di in range(pool):
                row = (ti * pool + di) * Wf + tj * pool
                m[r, row:row + pool] = 1.0
    return jnp.asarray(m, jnp.bfloat16), T


def patch_fusion_attention(feats, fc_w, fc_b, ffc_w, ffc_b):
    """feats: (B, Hf, Wf, C) bf16.  Returns (B, 2) f32 logits."""
    B, Hf, Wf, C = feats.shape
    pool_mat, T = _make_pool_matrix(Hf, Wf)
    feats2d = feats.reshape(B, Hf * Wf, C)      # metadata-only view (row-major, C last)
    ffc_b2 = ffc_b.reshape(1, 2)
    # TODO(synk): for B == 1 on v7x add a second parallel grid axis (or batch several images
    # per step) so both TensorCores stay busy.
    out = pl.pallas_call(
        fusion_kernel,
        out_shape=jax.ShapeDtypeStruct((B, 1, 2), jnp.float32),
        grid=(B,),
        in_specs=[
            pl.BlockSpec((T, Hf * Wf), lambda b: (0, 0)),             # bf16 pooling matrix (resident)
            pl.BlockSpec((1, Hf * Wf, C), lambda b: (b, 0, 0)),       # one image's bf16 feature map
            pl.BlockSpec((2, C), lambda b: (0, 0)),                   # fc.weight (f32)
            pl.BlockSpec(memory_space=pltpu.MemorySpace.SMEM),        # fc.bias (2,) scalars
            pl.BlockSpec((2, C), lambda b: (0, 0)),                   # fc_final.weight (f32)
            pl.BlockSpec((1, 2), lambda b: (0, 0)),                   # fc_final.bias (1, 2)
        ],
        out_specs=pl.BlockSpec((1, 1, 2), lambda b: (b, 0, 0)),
        compiler_params=pltpu.CompilerParams(
            dimension_semantics=("parallel",),
            vmem_limit_bytes=48 << 20),
    )(pool_mat, feats2d, fc_w, fc_b, ffc_w, ffc_b2)
    return out[:, 0, :]


# ---------------------------------------------------------------------------
# SwinBreastCancer.forward
# ---------------------------------------------------------------------------
def swin_breast_cancer_forward(x, params):
    B, Cin, H, W = x.shape
    assert Cin == 1 and H % (PATCH * POOL) == 0 and W % (PATCH * POOL) == 0
    Hf, Wf = H // PATCH, W // PATCH

    # Gray2RGBadaptor folded into the embedding weight: repeating the gray channel to RGB
    # and projecting == projecting the gray patch with the channel-summed weight (exact).
    w_fold = params["w_embed"].reshape(PATCH * PATCH, 3, FEAT_DIM).sum(axis=1)
    w_fold = w_fold.astype(jnp.bfloat16)

    # im2col on the single gray channel, materialized in bf16 (half the streamed bytes and
    # half the transpose traffic vs f32; the kernel does no cast).
    # TODO(synk): express this patch re-layout via the embed kernel's in_spec index_map so
    # the reorder rides on the kernel DMA instead of a separate XLA copy before the call.
    p = x[:, 0].astype(jnp.bfloat16).reshape(B, Hf, PATCH, Wf, PATCH)
    p = p.transpose(0, 1, 3, 2, 4).reshape(B * Hf * Wf, PATCH * PATCH)

    feats = patch_backbone(p, w_fold, params["b_embed"],
                           params["ln_gamma"], params["ln_beta"])
    feats = feats.reshape(B, Hf, Wf, FEAT_DIM)   # NHWC bf16 feature map (like swin forward_features)

    # AvgPool2d(7) + PatchFusionAttention fused in one Pallas kernel -> (B, 2)
    return patch_fusion_attention(feats, params["fc_w"], params["fc_b"],
                                  params["fc_final_w"], params["fc_final_b"])


def init_params(key):
    k = jax.random.split(key, 5)
    K = PATCH * PATCH * 3   # backbone embedding weight is defined for RGB input
    return dict(
        w_embed=jax.random.normal(k[0], (K, FEAT_DIM), jnp.float32) * 0.02,
        b_embed=jnp.zeros((1, FEAT_DIM), jnp.float32),
        ln_gamma=jnp.ones((1, FEAT_DIM), jnp.float32),
        ln_beta=jnp.zeros((1, FEAT_DIM), jnp.float32),
        fc_w=jax.random.normal(k[1], (2, FEAT_DIM), jnp.float32) * 0.02,        # nn.Linear(feat,2).weight
        fc_b=jax.random.normal(k[2], (2,), jnp.float32) * 0.02,
        fc_final_w=jax.random.normal(k[3], (2, FEAT_DIM), jnp.float32) * 0.02,  # nn.Linear(feat,2).weight
        fc_final_b=jax.random.normal(k[4], (2,), jnp.float32) * 0.02,
    )


if __name__ == "__main__":
    key = jax.random.PRNGKey(0)
    kx, kp = jax.random.split(key)
    # Small grayscale NCHW input; 224/16 = 14 feature positions -> 7x7 avg-pool -> 2x2 = 4 tokens.
    x = jax.random.normal(kx, (2, 1, 224, 224), jnp.float32)
    params = init_params(kp)
    out = jax.jit(swin_breast_cancer_forward)(x, params)
    out = jax.block_until_ready(out)
    assert out.shape == (2, 2) and bool(jnp.all(jnp.isfinite(out)))
    print("KERNEL_OK")
</pallas_src>

<mosaic_0001>
module attributes {stable_mosaic.version = 11 : i64} {
  func.func @embed_kernel(%arg0: i32, %arg1: memref<392x256xbf16, #tpu.memory_space<vmem>>, %arg2: memref<256x128xbf16, #tpu.memory_space<vmem>>, %arg3: memref<1x128xf32, #tpu.memory_space<vmem>>, %arg4: memref<1x128xf32, #tpu.memory_space<vmem>>, %arg5: memref<1x128xf32, #tpu.memory_space<vmem>>, %arg6: memref<392x128xbf16, #tpu.memory_space<vmem>>) attributes {dimension_semantics = [#tpu.dimension_semantics<parallel>], iteration_bounds = array<i64: 1>, scalar_prefetch = 0 : i64, scratch_operands = 0 : i64, tpu.core_type = #tpu.core_type<tc>, window_params = [{transform_indices = @transform_0, window_bounds = array<i64: 392, 256>}, {pipeline_mode = #tpu.pipeline_mode<synchronous>, transform_indices = @transform_1, window_bounds = array<i64: 256, 128>}, {pipeline_mode = #tpu.pipeline_mode<synchronous>, transform_indices = @transform_2, window_bounds = array<i64: 1, 128>}, {pipeline_mode = #tpu.pipeline_mode<synchronous>, transform_indices = @transform_3, window_bounds = array<i64: 1, 128>}, {pipeline_mode = #tpu.pipeline_mode<synchronous>, transform_indices = @transform_4, window_bounds = array<i64: 1, 128>}, {transform_indices = @transform_5, window_bounds = array<i64: 392, 128>}]} {
    %c0 = arith.constant 0 : index
    %c0_0 = arith.constant 0 : index
    %0 = vector.load %arg1[%c0, %c0_0] : memref<392x256xbf16, #tpu.memory_space<vmem>>, vector<392x256xbf16>
    %c0_1 = arith.constant 0 : index
    %c0_2 = arith.constant 0 : index
    %1 = vector.load %arg2[%c0_1, %c0_2] : memref<256x128xbf16, #tpu.memory_space<vmem>>, vector<256x128xbf16>
    %cst = arith.constant dense<0.000000e+00> : vector<392x128xf32>
    %2 = tpu.matmul %0, %1, %cst {dimension_numbers = #tpu.dot_dimension_numbers<[1], [0], [0], [1], [0, 0, 1, 1], [], []>} : vector<392x256xbf16>, vector<256x128xbf16>, vector<392x128xf32> -> vector<392x128xf32>
    %c0_3 = arith.constant 0 : index
    %c0_4 = arith.constant 0 : index
    %3 = vector.load %arg3[%c0_3, %c0_4] : memref<1x128xf32, #tpu.memory_space<vmem>>, vector<1x128xf32>
    %4 = vector.broadcast %3 : vector<1x128xf32> to vector<392x128xf32>
    %5 = arith.addf %2, %4 : vector<392x128xf32>
    %cst_5 = arith.constant dense<0.000000e+00> : vector<392xf32>
    %6 = vector.multi_reduction <add>, %5, %cst_5 [1] : vector<392x128xf32> to vector<392xf32>
    %7 = vector.shape_cast %6 : vector<392xf32> to vector<392x1xf32>
    %8 = arith.mulf %5, %5 : vector<392x128xf32>
    %cst_6 = arith.constant dense<0.000000e+00> : vector<392xf32>
    %9 = vector.multi_reduction <add>, %8, %cst_6 [1] : vector<392x128xf32> to vector<392xf32>
    %10 = vector.shape_cast %9 : vector<392xf32> to vector<392x1xf32>
    %cst_7 = arith.constant 7.812500e-03 : f32
    %11 = vector.broadcast %cst_7 : f32 to vector<392x1xf32>
    %12 = arith.mulf %7, %11 : vector<392x1xf32>
    %cst_8 = arith.constant 7.812500e-03 : f32
    %13 = vector.broadcast %cst_8 : f32 to vector<392x1xf32>
    %14 = arith.mulf %10, %13 : vector<392x1xf32>
    %15 = arith.mulf %12, %12 : vector<392x1xf32>
    %16 = arith.subf %14, %15 : vector<392x1xf32>
    %17 = vector.broadcast %12 : vector<392x1xf32> to vector<392x128xf32>
    %18 = arith.subf %5, %17 : vector<392x128xf32>
    %cst_9 = arith.constant 9.99999974E-6 : f32
    %19 = vector.broadcast %cst_9 : f32 to vector<392x1xf32>
    %20 = arith.addf %16, %19 : vector<392x1xf32>
    %21 = math.rsqrt %20 : vector<392x1xf32>
    %22 = vector.broadcast %21 : vector<392x1xf32> to vector<392x128xf32>
    %23 = arith.mulf %18, %22 : vector<392x128xf32>
    %c0_10 = arith.constant 0 : index
    %c0_11 = arith.constant 0 : index
    %24 = vector.load %arg4[%c0_10, %c0_11] : memref<1x128xf32, #tpu.memory_space<vmem>>, vector<1x128xf32>
    %25 = vector.broadcast %24 : vector<1x128xf32> to vector<392x128xf32>
    %26 = arith.mulf %23, %25 : vector<392x128xf32>
    %c0_12 = arith.constant 0 : index
    %c0_13 = arith.constant 0 : index
    %27 = vector.load %arg5[%c0_12, %c0_13] : memref<1x128xf32, #tpu.memory_space<vmem>>, vector<1x128xf32>
    %28 = vector.broadcast %27 : vector<1x128xf32> to vector<392x128xf32>
    %29 = arith.addf %26, %28 : vector<392x128xf32>
    %30 = arith.truncf %29 : vector<392x128xf32> to vector<392x128xbf16>
    %c0_14 = arith.constant 0 : index
    %c0_15 = arith.constant 0 : index
    %31 = vector.load %arg6[%c0_14, %c0_15] : memref<392x128xbf16, #tpu.memory_space<vmem>>, vector<392x128xbf16>
    tpu.vector_store %arg6[%c0_14, %c0_15], %30 {strides = array<i32>} : memref<392x128xbf16, #tpu.memory_space<vmem>>, vector<392x128xbf16>,
    return
  }
  func.func @transform_0(%arg0: i32) -> (i32, i32) {
    %c0_i32 = arith.constant 0 : i32
    %c0_i32_0 = arith.constant 0 : i32
    return %arg0, %c0_i32 : i32, i32
  }
  func.func @transform_1(%arg0: i32) -> (i32, i32) {
    %c0_i32 = arith.constant 0 : i32
    %c0_i32_0 = arith.constant 0 : i32
    %c0_i32_1 = arith.constant 0 : i32
    return %c0_i32, %c0_i32_0 : i32, i32
  }
  func.func @transform_2(%arg0: i32) -> (i32, i32) {
    %c0_i32 = arith.constant 0 : i32
    %c0_i32_0 = arith.constant 0 : i32
    %c0_i32_1 = arith.constant 0 : i32
    return %c0_i32, %c0_i32_0 : i32, i32
  }
  func.func @transform_3(%arg0: i32) -> (i32, i32) {
    %c0_i32 = arith.constant 0 : i32
    %c0_i32_0 = arith.constant 0 : i32
    %c0_i32_1 = arith.constant 0 : i32
    return %c0_i32, %c0_i32_0 : i32, i32
  }
  func.func @transform_4(%arg0: i32) -> (i32, i32) {
    %c0_i32 = arith.constant 0 : i32
    %c0_i32_0 = arith.constant 0 : i32
    %c0_i32_1 = arith.constant 0 : i32
    return %c0_i32, %c0_i32_0 : i32, i32
  }
  func.func @transform_5(%arg0: i32) -> (i32, i32) {
    %c0_i32 = arith.constant 0 : i32
    %c0_i32_0 = arith.constant 0 : i32
    return %arg0, %c0_i32 : i32, i32
  }
}

module attributes {stable_mosaic.version = 11 : i64} {
  func.func @fusion_kernel(%arg0: i32, %arg1: memref<4x196xbf16, #tpu.memory_space<vmem>>, %arg2: memref<1x196x128xbf16, #tpu.memory_space<vmem>>, %arg3: memref<2x128xf32, #tpu.memory_space<vmem>>, %arg4: memref<2xf32, #tpu.memory_space<smem>>, %arg5: memref<2x128xf32, #tpu.memory_space<vmem>>, %arg6: memref<1x2xf32, #tpu.memory_space<vmem>>, %arg7: memref<1x1x2xf32, #tpu.memory_space<vmem>>) attributes {dimension_semantics = [#tpu.dimension_semantics<parallel>], iteration_bounds = array<i64: 2>, scalar_prefetch = 0 : i64, scratch_operands = 0 : i64, tpu.core_type = #tpu.core_type<tc>, window_params = [{pipeline_mode = #tpu.pipeline_mode<synchronous>, transform_indices = @transform_0, window_bounds = array<i64: 4, 196>}, {transform_indices = @transform_1, window_bounds = array<i64: 1, 196, 128>}, {pipeline_mode = #tpu.pipeline_mode<synchronous>, transform_indices = @transform_2, window_bounds = array<i64: 2, 128>}, {transform_indices = @transform_3, window_bounds = array<i64: 2>}, {pipeline_mode = #tpu.pipeline_mode<synchronous>, transform_indices = @transform_4, window_bounds = array<i64: 2, 128>}, {pipeline_mode = #tpu.pipeline_mode<synchronous>, transform_indices = @transform_5, window_bounds = array<i64: 1, 2>}, {transform_indices = @transform_6, window_bounds = array<i64: 1, 1, 2>}]} {
    %c0 = arith.constant 0 : index
    %c0_0 = arith.constant 0 : index
    %c0_1 = arith.constant 0 : index
    %0 = vector.load %arg2[%c0, %c0_0, %c0_1] : memref<1x196x128xbf16, #tpu.memory_space<vmem>>, vector<1x196x128xbf16>
    %1 = vector.shape_cast %0 : vector<1x196x128xbf16> to vector<196x128xbf16>
    %c0_2 = arith.constant 0 : index
    %c0_3 = arith.constant 0 : index
    %2 = vector.load %arg1[%c0_2, %c0_3] : memref<4x196xbf16, #tpu.memory_space<vmem>>, vector<4x196xbf16>
    %cst = arith.constant dense<0.000000e+00> : vector<4x128xf32>
    %3 = tpu.matmul %2, %1, %cst {dimension_numbers = #tpu.dot_dimension_numbers<[1], [0], [0], [1], [0, 0, 1, 1], [], []>} : vector<4x196xbf16>, vector<196x128xbf16>, vector<4x128xf32> -> vector<4x128xf32>
    %cst_4 = arith.constant 0.0204081628 : f32
    %4 = vector.broadcast %cst_4 : f32 to vector<4x128xf32>
    %5 = arith.mulf %3, %4 : vector<4x128xf32>
    %6 = arith.mulf %5, %5 : vector<4x128xf32>
    %cst_5 = arith.constant dense<0.000000e+00> : vector<4xf32>
    %7 = vector.multi_reduction <add>, %6, %cst_5 [1] : vector<4x128xf32> to vector<4xf32>
    %8 = vector.shape_cast %7 : vector<4xf32> to vector<4x1xf32>
    %cst_6 = arith.constant 9.99999996E-13 : f32
    %9 = vector.broadcast %cst_6 : f32 to vector<4x1xf32>
    %10 = arith.addf %8, %9 : vector<4x1xf32>
    %11 = math.rsqrt %10 : vector<4x1xf32>
    %12 = vector.broadcast %11 : vector<4x1xf32> to vector<4x128xf32>
    %13 = arith.mulf %5, %12 : vector<4x128xf32>
    %c0_7 = arith.constant 0 : index
    %c0_8 = arith.constant 0 : index
    %14 = vector.load %arg3[%c0_7, %c0_8] : memref<2x128xf32, #tpu.memory_space<vmem>>, vector<2x128xf32>
    %cst_9 = arith.constant dense<0.000000e+00> : vector<2x4xf32>
    %15 = tpu.matmul %14, %5, %cst_9 {dimension_numbers = #tpu.dot_dimension_numbers<[1], [1], [0], [0], [0, 0, 1, 0], [], []>} : vector<2x128xf32>, vector<4x128xf32>, vector<2x4xf32> -> vector<2x4xf32>
    %16 = vector.extract_strided_slice %15 {offsets = [0, 0], sizes = [1, 4], strides = [1, 1]} : vector<2x4xf32> to vector<1x4xf32>
    %c0_10 = arith.constant 0 : index
    %17 = memref.load %arg4[%c0_10] : memref<2xf32, #tpu.memory_space<smem>>
    %18 = vector.broadcast %17 : f32 to vector<1x4xf32>
    %19 = arith.addf %16, %18 : vector<1x4xf32>
    %20 = vector.extract_strided_slice %15 {offsets = [1, 0], sizes = [1, 4], strides = [1, 1]} : vector<2x4xf32> to vector<1x4xf32>
    %c1 = arith.constant 1 : index
    %21 = memref.load %arg4[%c1] : memref<2xf32, #tpu.memory_space<smem>>
    %22 = vector.broadcast %21 : f32 to vector<1x4xf32>
    %23 = arith.addf %20, %22 : vector<1x4xf32>
    %24 = arith.maximumf %19, %23 : vector<1x4xf32>
    %25 = arith.subf %19, %24 : vector<1x4xf32>
    %26 = math.exp %25 : vector<1x4xf32>
    %27 = arith.subf %23, %24 : vector<1x4xf32>
    %28 = math.exp %27 : vector<1x4xf32>
    %29 = arith.addf %26, %28 : vector<1x4xf32>
    %30 = arith.divf %28, %29 : vector<1x4xf32>
    %31 = tpu.iota {dimensions = array<i32: 1>} : vector<1x4xi32>
    %cst_11 = arith.constant dense<0xFF800000> : vector<1xf32>
    %32 = vector.multi_reduction <maximumf>, %30, %cst_11 [1] : vector<1x4xf32> to vector<1xf32>
    %33 = vector.shape_cast %32 : vector<1xf32> to vector<1x1xf32>
    %34 = vector.broadcast %33 : vector<1x1xf32> to vector<1x4xf32>
    %35 = arith.cmpf oeq, %30, %34 : vector<1x4xf32>
    %c4_i32 = arith.constant 4 : i32
    %36 = vector.broadcast %c4_i32 : i32 to vector<1x4xi32>
    %37 = arith.select %35, %31, %36 : vector<1x4xi1>, vector<1x4xi32>
    %cst_12 = arith.constant dense<2147483647> : vector<1xi32>
    %38 = vector.multi_reduction <minsi>, %37, %cst_12 [1] : vector<1x4xi32> to vector<1xi32>
    %39 = vector.shape_cast %38 : vector<1xi32> to vector<1x1xi32>
    %40 = vector.broadcast %39 : vector<1x1xi32> to vector<1x4xi32>
    %41 = arith.cmpi eq, %31, %40 : vector<1x4xi32>
    %42 = arith.extui %41 : vector<1x4xi1> to vector<1x4xi32>
    %43 = arith.sitofp %42 : vector<1x4xi32> to vector<1x4xf32>
    %cst_13 = arith.constant dense<0.000000e+00> : vector<1x128xf32>
    %44 = tpu.matmul %43, %13, %cst_13 {dimension_numbers = #tpu.dot_dimension_numbers<[1], [0], [0], [1], [0, 0, 1, 1], [], []>} : vector<1x4xf32>, vector<4x128xf32>, vector<1x128xf32> -> vector<1x128xf32>
    %cst_14 = arith.constant dense<0.000000e+00> : vector<1x4xf32>
    %45 = tpu.matmul %44, %13, %cst_14 {dimension_numbers = #tpu.dot_dimension_numbers<[1], [1], [0], [0], [0, 0, 1, 0], [], []>} : vector<1x128xf32>, vector<4x128xf32>, vector<1x4xf32> -> vector<1x4xf32>
    %cst_15 = arith.constant dense<0xFF800000> : vector<1xf32>
    %46 = vector.multi_reduction <maximumf>, %45, %cst_15 [1] : vector<1x4xf32> to vector<1xf32>
    %47 = vector.shape_cast %46 : vector<1xf32> to vector<1x1xf32>
    %48 = vector.broadcast %47 : vector<1x1xf32> to vector<1x4xf32>
    %49 = arith.subf %45, %48 : vector<1x4xf32>
    %50 = math.exp %49 : vector<1x4xf32>
    %cst_16 = arith.constant dense<0.000000e+00> : vector<1xf32>
    %51 = vector.multi_reduction <add>, %50, %cst_16 [1] : vector<1x4xf32> to vector<1xf32>
    %52 = vector.shape_cast %51 : vector<1xf32> to vector<1x1xf32>
    %53 = vector.broadcast %52 : vector<1x1xf32> to vector<1x4xf32>
    %54 = arith.divf %50, %53 : vector<1x4xf32>
    %55 = arith.mulf %54, %30 : vector<1x4xf32>
    %cst_17 = arith.constant dense<0.000000e+00> : vector<1xf32>
    %56 = vector.multi_reduction <add>, %55, %cst_17 [1] : vector<1x4xf32> to vector<1xf32>
    %57 = vector.shape_cast %56 : vector<1xf32> to vector<1x1xf32>
    %58 = vector.broadcast %57 : vector<1x1xf32> to vector<1x4xf32>
    %59 = arith.divf %55, %58 : vector<1x4xf32>
    %cst_18 = arith.constant dense<0.000000e+00> : vector<1x128xf32>
    %60 = tpu.matmul %59, %5, %cst_18 {dimension_numbers = #tpu.dot_dimension_numbers<[1], [0], [0], [1], [0, 0, 1, 1], [], []>} : vector<1x4xf32>, vector<4x128xf32>, vector<1x128xf32> -> vector<1x128xf32>
    %c0_19 = arith.constant 0 : index
    %c0_20 = arith.constant 0 : index
    %61 = vector.load %arg5[%c0_19, %c0_20] : memref<2x128xf32, #tpu.memory_space<vmem>>, vector<2x128xf32>
    %cst_21 = arith.constant dense<0.000000e+00> : vector<1x2xf32>
    %62 = tpu.matmul %60, %61, %cst_21 {dimension_numbers = #tpu.dot_dimension_numbers<[1], [1], [0], [0], [0, 0, 1, 0], [], []>} : vector<1x128xf32>, vector<2x128xf32>, vector<1x2xf32> -> vector<1x2xf32>
    %c0_22 = arith.constant 0 : index
    %c0_23 = arith.constant 0 : index
    %63 = vector.load %arg6[%c0_22, %c0_23] : memref<1x2xf32, #tpu.memory_space<vmem>>, vector<1x2xf32>
    %64 = arith.addf %62, %63 : vector<1x2xf32>
    %c0_24 = arith.constant 0 : index
    %c0_25 = arith.constant 0 : index
    %c0_26 = arith.constant 0 : index
    %65 = vector.load %arg7[%c0_24, %c0_25, %c0_26] : memref<1x1x2xf32, #tpu.memory_space<vmem>>, vector<1x1x2xf32>
    %66 = vector.shape_cast %65 : vector<1x1x2xf32> to vector<1x2xf32>
    %67 = vector.shape_cast %64 : vector<1x2xf32> to vector<1x1x2xf32>
    tpu.vector_store %arg7[%c0_24, %c0_25, %c0_26], %67 {strides = array<i32>} : memref<1x1x2xf32, #tpu.memory_space<vmem>>, vector<1x1x2xf32>,
    return
  }
  func.func @transform_0(%arg0: i32) -> (i32, i32) {
    %c0_i32 = arith.constant 0 : i32
    %c0_i32_0 = arith.constant 0 : i32
    %c0_i32_1 = arith.constant 0 : i32
    return %c0_i32, %c0_i32_0 : i32, i32
  }
  func.func @transform_1(%arg0: i32) -> (i32, i32, i32) {
    %c0_i32 = arith.constant 0 : i32
    %c0_i32_0 = arith.constant 0 : i32
    %c0_i32_1 = arith.constant 0 : i32
    return %arg0, %c0_i32, %c0_i32_0 : i32, i32, i32
  }
  func.func @transform_2(%arg0: i32) -> (i32, i32) {
    %c0_i32 = arith.constant 0 : i32
    %c0_i32_0 = arith.constant 0 : i32
    %c0_i32_1 = arith.constant 0 : i32
    return %c0_i32, %c0_i32_0 : i32, i32
  }
  func.func @transform_3(%arg0: i32) -> i32 {
    %c0_i32 = arith.constant 0 : i32
    %c0_i32_0 = arith.constant 0 : i32
    return %c0_i32 : i32
  }
  func.func @transform_4(%arg0: i32) -> (i32, i32) {
    %c0_i32 = arith.constant 0 : i32
    %c0_i32_0 = arith.constant 0 : i32
    %c0_i32_1 = arith.constant 0 : i32
    return %c0_i32, %c0_i32_0 : i32, i32
  }
  func.func @transform_5(%arg0: i32) -> (i32, i32) {
    %c0_i32 = arith.constant 0 : i32
    %c0_i32_0 = arith.constant 0 : i32
    %c0_i32_1 = arith.constant 0 : i32
    return %c0_i32, %c0_i32_0 : i32, i32
  }
  func.func @transform_6(%arg0: i32) -> (i32, i32, i32) {
    %c0_i32 = arith.constant 0 : i32
    %c0_i32_0 = arith.constant 0 : i32
    %c0_i32_1 = arith.constant 0 : i32
    return %arg0, %c0_i32, %c0_i32_0 : i32, i32, i32
  }
}

</mosaic_0001>

<llo_original>
// kernel: swin_breast_cancer_forward.2
$region0: #{swin_breast_cancer_forward.2}
  #allocation0 [shape = 'u32[]', space=smem, size = 0x4, offset = 0x4, fixed_abs, tag = 'smem constant byte address 0x4 - core index']
  #allocation1 [shape = 'u32[72,128]{1,0:T(1,128)}', space=vmem, size = 0x9000, scoped, tag = 'internal scratch']
  %s0 = inlined_call_operand.vmem [shape: bf16[392,256], index: 0, kind: input, shape index: {}]
  %s1 = inlined_call_operand.vmem [shape: bf16[256,128], index: 1, kind: input, shape index: {}]
  %s2 = inlined_call_operand.vmem [shape: f32[1,128], index: 2, kind: input, shape index: {}]
  %s3 = inlined_call_operand.vmem [shape: f32[1,128], index: 3, kind: input, shape index: {}]
  %s4 = inlined_call_operand.vmem [shape: f32[1,128], index: 4, kind: input, shape index: {}]
  %s5 = inlined_call_operand.vmem [shape: bf16[392,128], index: 5, kind: output, shape index: {}]
  %s6 = sld [smem:[#allocation0]]
  $region30: #{swin_breast_cancer_forward.2} parent=0
    _
  %s8 = ssub.s32 1, %s6
  %s9 = scalar_select 0, %s8, %s6
  // Predicated region
  $region2: #{swin_breast_cancer_forward.2} parent=0 // pred_check
    _
  $region3: #{swin_breast_cancer_forward.2} parent=0 // pred_check_branch
    %11 = sbr.rel (0) target = $region5
  $region4: #{swin_breast_cancer_forward.2} parent=0 // pred_region
    _
  $region5: #{swin_breast_cancer_forward.2} parent=0 // pred_fallthru
    _
  // Predicated region
  $region6: #{swin_breast_cancer_forward.2} parent=0 // pred_check
    _
  $region7: #{swin_breast_cancer_forward.2} parent=0 // pred_check_branch
    %13 = sbr.rel (0) target = $region9
  $region8: #{swin_breast_cancer_forward.2} parent=0 // pred_region
    _
  $region9: #{swin_breast_cancer_forward.2} parent=0 // pred_fallthru
    _
  // Predicated region
  $region10: #{swin_breast_cancer_forward.2} parent=0 // pred_check
    _
  $region11: #{swin_breast_cancer_forward.2} parent=0 // pred_check_branch
    %15 = sbr.rel (0) target = $region13
  $region12: #{swin_breast_cancer_forward.2} parent=0 // pred_region
    _
  $region13: #{swin_breast_cancer_forward.2} parent=0 // pred_fallthru
    _
  // Predicated region
  $region14: #{swin_breast_cancer_forward.2} parent=0 // pred_check
    _
  $region15: #{swin_breast_cancer_forward.2} parent=0 // pred_check_branch
    %17 = sbr.rel (0) target = $region17
  $region16: #{swin_breast_cancer_forward.2} parent=0 // pred_region
    _
  $region17: #{swin_breast_cancer_forward.2} parent=0 // pred_fallthru
    _
  // Predicated region
  $region18: #{swin_breast_cancer_forward.2} parent=0 // pred_check
    _
  $region19: #{swin_breast_cancer_forward.2} parent=0 // pred_check_branch
    %19 = sbr.rel (0) target = $region21
  $region20: #{swin_breast_cancer_forward.2} parent=0 // pred_region
    _
  $region21: #{swin_breast_cancer_forward.2} parent=0 // pred_fallthru
    _
  %v20 = vld [vmem:[%s0] sm:$0xff]
  %v21 = vld [vmem:[%s0 + $0x8] sm:$0xff]
  %v22 = vld [vmem:[%s0 + $0x10] sm:$0xff]
  %v23 = vld [vmem:[%s0 + $0x18] sm:$0xff]
  %v24 = vld [vmem:[%s0 + $0x20] sm:$0xff]
  %v25 = vld [vmem:[%s0 + $0x28] sm:$0xff]
  %v26 = vld [vmem:[%s0 + $0x30] sm:$0xff]
  %v27 = vld [vmem:[%s0 + $0x38] sm:$0xff]
  %v28 = vld [vmem:[%s0 + $0x40] sm:$0xff]
  %v29 = vld [vmem:[%s0 + $0x48] sm:$0xff]
  %v30 = vld [vmem:[%s0 + $0x50] sm:$0xff]
  %v31 = vld [vmem:[%s0 + $0x58] sm:$0xff]
  %v32 = vld [vmem:[%s0 + $0x60] sm:$0xff]
  %v33 = vld [vmem:[%s0 + $0x68] sm:$0xff]
  %v34 = vld [vmem:[%s0 + $0x70] sm:$0xff]
  %v35 = vld [vmem:[%s0 + $0x78] sm:$0xff]
  %v36 = vld [vmem:[%s0 + $0x80] sm:$0xff]
  %v37 = vld [vmem:[%s0 + $0x88] sm:$0xff]
  %v38 = vld [vmem:[%s0 + $0x90] sm:$0xff]
  %v39 = vld [vmem:[%s0 + $0x98] sm:$0xff]
  %v40 = vld [vmem:[%s0 + $0xa0] sm:$0xff]
  %v41 = vld [vmem:[%s0 + $0xa8] sm:$0xff]
  %v42 = vld [vmem:[%s0 + $0xb0] sm:$0xff]
  %v43 = vld [vmem:[%s0 + $0xb8] sm:$0xff]
  %v44 = vld [vmem:[%s0 + $0xc0] sm:$0xff]
  %v45 = vld [vmem:[%s0 + $0xc8] sm:$0xff]
  %v46 = vld [vmem:[%s0 + $0xd0] sm:$0xff]
  %v47 = vld [vmem:[%s0 + $0xd8] sm:$0xff]
  %v48 = vld [vmem:[%s0 + $0xe0] sm:$0xff]
  %v49 = vld [vmem:[%s0 + $0xe8] sm:$0xff]
  %v50 = vld [vmem:[%s0 + $0xf0] sm:$0xff]
  %v51 = vld [vmem:[%s0 + $0xf8] sm:$0xff]
  %v52 = vld [vmem:[%s0 + $0x100] sm:$0xff]
  %v53 = vld [vmem:[%s0 + $0x108] sm:$0xff]
  %v54 = vld [vmem:[%s0 + $0x110] sm:$0xff]
  %v55 = vld [vmem:[%s0 + $0x118] sm:$0xff]
  %v56 = vld [vmem:[%s0 + $0x120] sm:$0xff]
  %v57 = vld [vmem:[%s0 + $0x128] sm:$0xff]
  %v58 = vld [vmem:[%s0 + $0x130] sm:$0xff]
  %v59 = vld [vmem:[%s0 + $0x138] sm:$0xff]
  %v60 = vld [vmem:[%s0 + $0x140] sm:$0xff]
  %v61 = vld [vmem:[%s0 + $0x148] sm:$0xff]
  %v62 = vld [vmem:[%s0 + $0x150] sm:$0xff]
  %v63 = vld [vmem:[%s0 + $0x158] sm:$0xff]
  %v64 = vld [vmem:[%s0 + $0x160] sm:$0xff]
  %v65 = vld [vmem:[%s0 + $0x168] sm:$0xff]
  %v66 = vld [vmem:[%s0 + $0x170] sm:$0xff]
  %v67 = vld [vmem:[%s0 + $0x178] sm:$0xff]
  %v68 = vld [vmem:[%s0 + $0x180] sm:$0xff]
  %v69 = vld [vmem:[%s1] sm:$0xf]
  %v70 = vld [vmem:[%s1 + $0x4] sm:$0xf]
  %v71 = vld [vmem:[%s1 + $0x8] sm:$0xf]
  %v72 = vld [vmem:[%s1 + $0xc] sm:$0xf]
  %v73 = vld [vmem:[%s1 + $0x10] sm:$0xf]
  %v74 = vld [vmem:[%s1 + $0x14] sm:$0xf]
  %v75 = vld [vmem:[%s1 + $0x18] sm:$0xf]
  %v76 = vld [vmem:[%s1 + $0x1c] sm:$0xf]
  %v77 = vld [vmem:[%s1 + $0x20] sm:$0xf]
  %v78 = vld [vmem:[%s1 + $0x24] sm:$0xf]
  %v79 = vld [vmem:[%s1 + $0x28] sm:$0xf]
  %v80 = vld [vmem:[%s1 + $0x2c] sm:$0xf]
  %v81 = vld [vmem:[%s1 + $0x30] sm:$0xf]
  %v82 = vld [vmem:[%s1 + $0x34] sm:$0xf]
  %v83 = vld [vmem:[%s1 + $0x38] sm:$0xf]
  %v84 = vld [vmem:[%s1 + $0x3c] sm:$0xf]
  %v85 = vld [vmem:[%s1 + $0x40] sm:$0xf]
  %v86 = vld [vmem:[%s1 + $0x44] sm:$0xf]
  %v87 = vld [vmem:[%s1 + $0x48] sm:$0xf]
  %v88 = vld [vmem:[%s1 + $0x4c] sm:$0xf]
  %v89 = vld [vmem:[%s1 + $0x50] sm:$0xf]
  %v90 = vld [vmem:[%s1 + $0x54] sm:$0xf]
  %v91 = vld [vmem:[%s1 + $0x58] sm:$0xf]
  %v92 = vld [vmem:[%s1 + $0x5c] sm:$0xf]
  %v93 = vld [vmem:[%s1 + $0x60] sm:$0xf]
  %v94 = vld [vmem:[%s1 + $0x64] sm:$0xf]
  %v95 = vld [vmem:[%s1 + $0x68] sm:$0xf]
  %v96 = vld [vmem:[%s1 + $0x6c] sm:$0xf]
  %v97 = vld [vmem:[%s1 + $0x70] sm:$0xf]
  %v98 = vld [vmem:[%s1 + $0x74] sm:$0xf]
  %v99 = vld [vmem:[%s1 + $0x78] sm:$0xf]
  %v100 = vld [vmem:[%s1 + $0x7c] sm:$0xf]
  %v101 = vld [vmem:[%s2] sm:$0x1]
  %v103 = vperm.slane %v101, 0
  %v154 = vunpack.c.l.b16 %v20
  %v155 = vunpack.c.h.b16 %v20
  %v156 = vunpack.c.l.b16 %v21
  %v157 = vunpack.c.h.b16 %v21
  %v158 = vunpack.c.l.b16 %v22
  %v159 = vunpack.c.h.b16 %v22
  %v160 = vunpack.c.l.b16 %v23
  %v161 = vunpack.c.h.b16 %v23
  %v162 = vunpack.c.l.b16 %v24
  %v163 = vunpack.c.h.b16 %v24
  %v164 = vunpack.c.l.b16 %v25
  %v165 = vunpack.c.h.b16 %v25
  %v166 = vunpack.c.l.b16 %v26
  %v167 = vunpack.c.h.b16 %v26
  %v168 = vunpack.c.l.b16 %v27
  %v169 = vunpack.c.h.b16 %v27
  %v170 = vunpack.c.l.b16 %v28
  %v171 = vunpack.c.h.b16 %v28
  %v172 = vunpack.c.l.b16 %v29
  %v173 = vunpack.c.h.b16 %v29
  %v174 = vunpack.c.l.b16 %v30
  %v175 = vunpack.c.h.b16 %v30
  %v176 = vunpack.c.l.b16 %v31
  %v177 = vunpack.c.h.b16 %v31
  %v178 = vunpack.c.l.b16 %v32
  %v179 = vunpack.c.h.b16 %v32
  %v180 = vunpack.c.l.b16 %v33
  %v181 = vunpack.c.h.b16 %v33
  %v182 = vunpack.c.l.b16 %v34
  %v183 = vunpack.c.h.b16 %v34
  %v184 = vunpack.c.l.b16 %v35
  %v185 = vunpack.c.h.b16 %v35
  %v186 = vunpack.c.l.b16 %v36
  %v187 = vunpack.c.h.b16 %v36
  %v188 = vunpack.c.l.b16 %v37
  %v189 = vunpack.c.h.b16 %v37
  %v190 = vunpack.c.l.b16 %v38
  %v191 = vunpack.c.h.b16 %v38
  %v192 = vunpack.c.l.b16 %v39
  %v193 = vunpack.c.h.b16 %v39
  %v194 = vunpack.c.l.b16 %v40
  %v195 = vunpack.c.h.b16 %v40
  %v196 = vunpack.c.l.b16 %v41
  %v197 = vunpack.c.h.b16 %v41
  %v198 = vunpack.c.l.b16 %v42
  %v199 = vunpack.c.h.b16 %v42
  %v200 = vunpack.c.l.b16 %v43
  %v201 = vunpack.c.h.b16 %v43
  %v202 = vunpack.c.l.b16 %v44
  %v203 = vunpack.c.h.b16 %v44
  %v204 = vunpack.c.l.b16 %v45
  %v205 = vunpack.c.h.b16 %v45
  %v206 = vunpack.c.l.b16 %v46
  %v207 = vunpack.c.h.b16 %v46
  %v208 = vunpack.c.l.b16 %v47
  %v209 = vunpack.c.h.b16 %v47
  %v210 = vunpack.c.l.b16 %v48
  %v211 = vunpack.c.h.b16 %v48
  %v212 = vunpack.c.l.b16 %v49
  %v213 = vunpack.c.h.b16 %v49
  %v214 = vunpack.c.l.b16 %v50
  %v215 = vunpack.c.h.b16 %v50
  %v216 = vunpack.c.l.b16 %v51
  %v217 = vunpack.c.h.b16 %v51
  %v218 = vunpack.c.l.b16 %v52
  %v219 = vunpack.c.h.b16 %v52
  %v220 = vunpack.c.l.b16 %v53
  %v221 = vunpack.c.h.b16 %v53
  %v222 = vunpack.c.l.b16 %v54
  %v223 = vunpack.c.h.b16 %v54
  %v224 = vunpack.c.l.b16 %v55
  %v225 = vunpack.c.h.b16 %v55
  %v226 = vunpack.c.l.b16 %v56
  %v227 = vunpack.c.h.b16 %v56
  %v228 = vunpack.c.l.b16 %v57
  %v229 = vunpack.c.h.b16 %v57
  %v230 = vunpack.c.l.b16 %v58
  %v231 = vunpack.c.h.b16 %v58
  %v232 = vunpack.c.l.b16 %v59
  %v233 = vunpack.c.h.b16 %v59
  %v234 = vunpack.c.l.b16 %v60
  %v235 = vunpack.c.h.b16 %v60
  %v236 = vunpack.c.l.b16 %v61
  %v237 = vunpack.c.h.b16 %v61
  %v238 = vunpack.c.l.b16 %v62
  %v239 = vunpack.c.h.b16 %v62
  %v240 = vunpack.c.l.b16 %v63
  %v241 = vunpack.c.h.b16 %v63
  %v242 = vunpack.c.l.b16 %v64
  %v243 = vunpack.c.h.b16 %v64
  %v244 = vunpack.c.l.b16 %v65
  %v245 = vunpack.c.h.b16 %v65
  %v246 = vunpack.c.l.b16 %v66
  %v247 = vunpack.c.h.b16 %v66
  %v248 = vunpack.c.l.b16 %v67
  %v249 = vunpack.c.h.b16 %v67
  %v250 = vunpack.c.l.b16 %v68
  %v251 = vunpack.c.h.b16 %v68
  %v252 = vpack.c.b16 %v156, %v154
  %v253 = vpack.c.b16 %v157, %v155
  %v254 = vpack.c.b16 %v160, %v158
  %v255 = vpack.c.b16 %v161, %v159
  %v256 = vpack.c.b16 %v164, %v162
  %v257 = vpack.c.b16 %v165, %v163
  %v258 = vpack.c.b16 %v168, %v166
  %v259 = vpack.c.b16 %v169, %v167
  %v260 = vpack.c.b16 %v172, %v170
  %v261 = vpack.c.b16 %v173, %v171
  %v262 = vpack.c.b16 %v176, %v174
  %v263 = vpack.c.b16 %v177, %v175
  %v264 = vpack.c.b16 %v180, %v178
  %v265 = vpack.c.b16 %v181, %v179
  %v266 = vpack.c.b16 %v184, %v182
  %v267 = vpack.c.b16 %v185, %v183
  %v268 = vpack.c.b16 %v188, %v186
  %v269 = vpack.c.b16 %v189, %v187
  %v270 = vpack.c.b16 %v192, %v190
  %v271 = vpack.c.b16 %v193, %v191
  %v272 = vpack.c.b16 %v196, %v194
  %v273 = vpack.c.b16 %v197, %v195
  %v274 = vpack.c.b16 %v200, %v198
  %v275 = vpack.c.b16 %v201, %v199
  %v276 = vpack.c.b16 %v204, %v202
  %v277 = vpack.c.b16 %v205, %v203
  %v278 = vpack.c.b16 %v208, %v206
  %v279 = vpack.c.b16 %v209, %v207
  %v280 = vpack.c.b16 %v212, %v210
  %v281 = vpack.c.b16 %v213, %v211
  %v282 = vpack.c.b16 %v216, %v214
  %v283 = vpack.c.b16 %v217, %v215
  %v284 = vpack.c.b16 %v220, %v218
  %v285 = vpack.c.b16 %v221, %v219
  %v286 = vpack.c.b16 %v224, %v222
  %v287 = vpack.c.b16 %v225, %v223
  %v288 = vpack.c.b16 %v228, %v226
  %v289 = vpack.c.b16 %v229, %v227
  %v290 = vpack.c.b16 %v232, %v230
  %v291 = vpack.c.b16 %v233, %v231
  %v292 = vpack.c.b16 %v236, %v234
  %v293 = vpack.c.b16 %v237, %v235
  %v294 = vpack.c.b16 %v240, %v238
  %v295 = vpack.c.b16 %v241, %v239
  %v296 = vpack.c.b16 %v244, %v242
  %v297 = vpack.c.b16 %v245, %v243
  %v298 = vpack.c.b16 %v248, %v246
  %v299 = vpack.c.b16 %v249, %v247
  %v300 = vpack.c.b16 %v250, %v250
  %v301 = vpack.c.b16 %v251, %v251
  %v384 = vunpack.c.l.b16 %v69
  %v385 = vunpack.c.l.b16 %v70
  %v386 = vunpack.c.l.b16 %v71
  %v387 = vunpack.c.l.b16 %v72
  %v388 = vunpack.c.l.b16 %v73
  %v389 = vunpack.c.l.b16 %v74
  %v390 = vunpack.c.l.b16 %v75
  %v391 = vunpack.c.l.b16 %v76
  %v392 = vunpack.c.l.b16 %v77
  %v393 = vunpack.c.l.b16 %v78
  %v394 = vunpack.c.l.b16 %v79
  %v395 = vunpack.c.l.b16 %v80
  %v396 = vunpack.c.l.b16 %v81
  %v397 = vunpack.c.l.b16 %v82
  %v398 = vunpack.c.l.b16 %v83
  %v399 = vunpack.c.l.b16 %v84
  %v400 = vunpack.c.l.b16 %v85
  %v401 = vunpack.c.l.b16 %v86
  %v402 = vunpack.c.l.b16 %v87
  %v403 = vunpack.c.l.b16 %v88
  %v404 = vunpack.c.l.b16 %v89
  %v405 = vunpack.c.l.b16 %v90
  %v406 = vunpack.c.l.b16 %v91
  %v407 = vunpack.c.l.b16 %v92
  %v408 = vunpack.c.l.b16 %v93
  %v409 = vunpack.c.l.b16 %v94
  %v410 = vunpack.c.l.b16 %v95
  %v411 = vunpack.c.l.b16 %v96
  %v412 = vunpack.c.l.b16 %v97
  %v413 = vunpack.c.l.b16 %v98
  %v414 = vunpack.c.l.b16 %v99
  %v415 = vunpack.c.l.b16 %v100
  %v416 = vpack.c.b16 %v385, %v384
  %v417 = vpack.c.b16 %v387, %v386
  %v418 = vpack.c.b16 %v389, %v388
  %v419 = vpack.c.b16 %v391, %v390
  %v420 = vpack.c.b16 %v393, %v392
  %v421 = vpack.c.b16 %v395, %v394
  %v422 = vpack.c.b16 %v397, %v396
  %v423 = vpack.c.b16 %v399, %v398
  %v424 = vpack.c.b16 %v401, %v400
  %v425 = vpack.c.b16 %v403, %v402
  %v426 = vpack.c.b16 %v405, %v404
  %v427 = vpack.c.b16 %v407, %v406
  %v428 = vpack.c.b16 %v409, %v408
  %v429 = vpack.c.b16 %v411, %v410
  %v430 = vpack.c.b16 %v413, %v412
  %v431 = vpack.c.b16 %v415, %v414
  %448 = vmatpush.bf16.msra.mxu0 %v423
  %449 = vmatpush.bf16.msra.mxu0 %v422
  %450 = vmatpush.bf16.msra.mxu0 %v421
  %451 = vmatpush.bf16.msra.mxu0 %v420
  %452 = vmatpush.bf16.msra.mxu0 %v419
  %453 = vmatpush.bf16.msra.mxu0 %v418
  %454 = vmatpush.bf16.msra.mxu0 %v417
  %455 = vmatpush.bf16.msra.mxu0 %v416
  %456 = vmatmul.bf16.gmra.mxu0 %v252
  %v457 = vpop.f32.mrf.mxu0
  %v458 = vadd.f32 %v103, %v457
  %v459 = vpop.f32.mrf.mxu0
  %v460 = vadd.f32 %v103, %v459
  %461 = vmatmul.bf16.gmra.mxu0 %v254
  %v462 = vpop.f32.mrf.mxu0
  %v463 = vadd.f32 %v103, %v462
  %v464 = vpop.f32.mrf.mxu0
  %v465 = vadd.f32 %v103, %v464
  %466 = vmatmul.bf16.gmra.mxu0 %v256
  %v467 = vpop.f32.mrf.mxu0
  %v468 = vadd.f32 %v103, %v467
  %v469 = vpop.f32.mrf.mxu0
  %v470 = vadd.f32 %v103, %v469
  %471 = vmatmul.bf16.gmra.mxu0 %v258
  %v472 = vpop.f32.mrf.mxu0
  %v473 = vadd.f32 %v103, %v472
  %v474 = vpop.f32.mrf.mxu0
  %v475 = vadd.f32 %v103, %v474
  %476 = vmatmul.bf16.gmra.mxu0 %v260
  %v477 = vpop.f32.mrf.mxu0
  %v478 = vadd.f32 %v103, %v477
  %v479 = vpop.f32.mrf.mxu0
  %v480 = vadd.f32 %v103, %v479
  %481 = vmatmul.bf16.gmra.mxu0 %v262
  %v482 = vpop.f32.mrf.mxu0
  %v483 = vadd.f32 %v103, %v482
  %v484 = vpop.f32.mrf.mxu0
  %v485 = vadd.f32 %v103, %v484
  %486 = vmatmul.bf16.gmra.mxu0 %v264
  %v487 = vpop.f32.mrf.mxu0
  %v488 = vadd.f32 %v103, %v487
  %v489 = vpop.f32.mrf.mxu0
  %v490 = vadd.f32 %v103, %v489
  %491 = vmatmul.bf16.gmra.mxu0 %v266
  %v492 = vpop.f32.mrf.mxu0
  %v493 = vadd.f32 %v103, %v492
  %v494 = vpop.f32.mrf.mxu0
  %v495 = vadd.f32 %v103, %v494
  %496 = vmatmul.bf16.gmra.mxu0 %v268
  %v497 = vpop.f32.mrf.mxu0
  %v498 = vadd.f32 %v103, %v497
  %v499 = vpop.f32.mrf.mxu0
  %v500 = vadd.f32 %v103, %v499
  %501 = vmatmul.bf16.gmra.mxu0 %v270
  %v502 = vpop.f32.mrf.mxu0
  %v503 = vadd.f32 %v103, %v502
  %v504 = vpop.f32.mrf.mxu0
  %v505 = vadd.f32 %v103, %v504
  %506 = vmatmul.bf16.gmra.mxu0 %v272
  %v507 = vpop.f32.mrf.mxu0
  %v508 = vadd.f32 %v103, %v507
  %v509 = vpop.f32.mrf.mxu0
  %v510 = vadd.f32 %v103, %v509
  %511 = vmatmul.bf16.gmra.mxu0 %v274
  %v512 = vpop.f32.mrf.mxu0
  %v513 = vadd.f32 %v103, %v512
  %v514 = vpop.f32.mrf.mxu0
  %v515 = vadd.f32 %v103, %v514
  %516 = vmatmul.bf16.gmra.mxu0 %v276
  %v517 = vpop.f32.mrf.mxu0
  %v518 = vadd.f32 %v103, %v517
  %v519 = vpop.f32.mrf.mxu0
  %v520 = vadd.f32 %v103, %v519
  %521 = vmatmul.bf16.gmra.mxu0 %v278
  %v522 = vpop.f32.mrf.mxu0
  %v523 = vadd.f32 %v103, %v522
  %v524 = vpop.f32.mrf.mxu0
  %v525 = vadd.f32 %v103, %v524
  %526 = vmatmul.bf16.gmra.mxu0 %v280
  %v527 = vpop.f32.mrf.mxu0
  %v528 = vadd.f32 %v103, %v527
  %v529 = vpop.f32.mrf.mxu0
  %v530 = vadd.f32 %v103, %v529
  %531 = vmatmul.bf16.gmra.mxu0 %v282
  %v532 = vpop.f32.mrf.mxu0
  %v533 = vadd.f32 %v103, %v532
  %v534 = vpop.f32.mrf.mxu0
  %v535 = vadd.f32 %v103, %v534
  %536 = vmatmul.bf16.gmra.mxu0 %v284
  %v537 = vpop.f32.mrf.mxu0
  %v538 = vadd.f32 %v103, %v537
  %v539 = vpop.f32.mrf.mxu0
  %v540 = vadd.f32 %v103, %v539
  %541 = vmatmul.bf16.gmra.mxu0 %v286
  %v542 = vpop.f32.mrf.mxu0
  %v543 = vadd.f32 %v103, %v542
  %v544 = vpop.f32.mrf.mxu0
  %v545 = vadd.f32 %v103, %v544
  %546 = vmatmul.bf16.gmra.mxu0 %v288
  %v547 = vpop.f32.mrf.mxu0
  %v548 = vadd.f32 %v103, %v547
  %v549 = vpop.f32.mrf.mxu0
  %v550 = vadd.f32 %v103, %v549
  %551 = vmatmul.bf16.gmra.mxu0 %v290
  %v552 = vpop.f32.mrf.mxu0
  %v553 = vadd.f32 %v103, %v552
  %v554 = vpop.f32.mrf.mxu0
  %v555 = vadd.f32 %v103, %v554
  %556 = vmatmul.bf16.gmra.mxu0 %v292
  %v557 = vpop.f32.mrf.mxu0
  %v558 = vadd.f32 %v103, %v557
  %v559 = vpop.f32.mrf.mxu0
  %v560 = vadd.f32 %v103, %v559
  %561 = vmatmul.bf16.gmra.mxu0 %v294
  %v562 = vpop.f32.mrf.mxu0
  %v563 = vadd.f32 %v103, %v562
  %v564 = vpop.f32.mrf.mxu0
  %v565 = vadd.f32 %v103, %v564
  %566 = vmatmul.bf16.gmra.mxu0 %v296
  %v567 = vpop.f32.mrf.mxu0
  %v568 = vadd.f32 %v103, %v567
  %v569 = vpop.f32.mrf.mxu0
  %v570 = vadd.f32 %v103, %v569
  %571 = vmatmul.bf16.gmra.mxu0 %v298
  %v572 = vpop.f32.mrf.mxu0
  %v573 = vadd.f32 %v103, %v572
  %v574 = vpop.f32.mrf.mxu0
  %v575 = vadd.f32 %v103, %v574
  %576 = vmatmul.bf16.gmra.mxu0 %v300
  %v577 = vpop.f32.mrf.mxu0
  %v578 = vadd.f32 %v103, %v577
  %v579 = vpop.f32.mrf.mxu0
  %580 = vdwg.mxu0
  %581 = vmatpush.bf16.msra.mxu0 %v431
  %582 = vmatpush.bf16.msra.mxu0 %v430
  %583 = vmatpush.bf16.msra.mxu0 %v429
  %584 = vmatpush.bf16.msra.mxu0 %v428
  %585 = vmatpush.bf16.msra.mxu0 %v427
  %586 = vmatpush.bf16.msra.mxu0 %v426
  %587 = vmatpush.bf16.msra.mxu0 %v425
  %588 = vmatpush.bf16.msra.mxu0 %v424
  %589 = vmatmul.bf16.gmra.mxu0 %v253
  %v590 = vpop.f32.mrf.mxu0
  %v591 = vadd.f32 %v458, %v590
  %v592 = vpop.f32.mrf.mxu0
  %v593 = vadd.f32 %v460, %v592
  %594 = vmatmul.bf16.gmra.mxu0 %v255
  %v595 = vpop.f32.mrf.mxu0
  %v596 = vadd.f32 %v463, %v595
  %v597 = vpop.f32.mrf.mxu0
  %v598 = vadd.f32 %v465, %v597
  %599 = vmatmul.bf16.gmra.mxu0 %v257
  %v600 = vpop.f32.mrf.mxu0
  %v601 = vadd.f32 %v468, %v600
  %v602 = vpop.f32.mrf.mxu0
  %v603 = vadd.f32 %v470, %v602
  %604 = vmatmul.bf16.gmra.mxu0 %v259
  %v605 = vpop.f32.mrf.mxu0
  %v606 = vadd.f32 %v473, %v605
  %v607 = vpop.f32.mrf.mxu0
  %v608 = vadd.f32 %v475, %v607
  %609 = vmatmul.bf16.gmra.mxu0 %v261
  %v610 = vpop.f32.mrf.mxu0
  %v611 = vadd.f32 %v478, %v610
  %v612 = vpop.f32.mrf.mxu0
  %v613 = vadd.f32 %v480, %v612
  %614 = vmatmul.bf16.gmra.mxu0 %v263
  %v615 = vpop.f32.mrf.mxu0
  %v616 = vadd.f32 %v483, %v615
  %v617 = vpop.f32.mrf.mxu0
  %v618 = vadd.f32 %v485, %v617
  %619 = vmatmul.bf16.gmra.mxu0 %v265
  %v620 = vpop.f32.mrf.mxu0
  %v621 = vadd.f32 %v488, %v620
  %v622 = vpop.f32.mrf.mxu0
  %v623 = vadd.f32 %v490, %v622
  %624 = vmatmul.bf16.gmra.mxu0 %v267
  %v625 = vpop.f32.mrf.mxu0
  %v626 = vadd.f32 %v493, %v625
  %v627 = vpop.f32.mrf.mxu0
  %v628 = vadd.f32 %v495, %v627
  %629 = vmatmul.bf16.gmra.mxu0 %v269
  %v630 = vpop.f32.mrf.mxu0
  %v631 = vadd.f32 %v498, %v630
  %v632 = vpop.f32.mrf.mxu0
  %v633 = vadd.f32 %v500, %v632
  %634 = vmatmul.bf16.gmra.mxu0 %v271
  %v635 = vpop.f32.mrf.mxu0
  %v636 = vadd.f32 %v503, %v635
  %v637 = vpop.f32.mrf.mxu0
  %v638 = vadd.f32 %v505, %v637
  %639 = vmatmul.bf16.gmra.mxu0 %v273
  %v640 = vpop.f32.mrf.mxu0
  %v641 = vadd.f32 %v508, %v640
  %v642 = vpop.f32.mrf.mxu0
  %v643 = vadd.f32 %v510, %v642
  %644 = vmatmul.bf16.gmra.mxu0 %v275
  %v645 = vpop.f32.mrf.mxu0
  %v646 = vadd.f32 %v513, %v645
  %v647 = vpop.f32.mrf.mxu0
  %v648 = vadd.f32 %v515, %v647
  %649 = vmatmul.bf16.gmra.mxu0 %v277
  %v650 = vpop.f32.mrf.mxu0
  %v651 = vadd.f32 %v518, %v650
  %v652 = vpop.f32.mrf.mxu0
  %v653 = vadd.f32 %v520, %v652
  %654 = vmatmul.bf16.gmra.mxu0 %v279
  %v655 = vpop.f32.mrf.mxu0
  %v656 = vadd.f32 %v523, %v655
  %v657 = vpop.f32.mrf.mxu0
  %v658 = vadd.f32 %v525, %v657
  %659 = vmatmul.bf16.gmra.mxu0 %v281
  %v660 = vpop.f32.mrf.mxu0
  %v661 = vadd.f32 %v528, %v660
  %v662 = vpop.f32.mrf.mxu0
  %v663 = vadd.f32 %v530, %v662
  %664 = vmatmul.bf16.gmra.mxu0 %v283
  %v665 = vpop.f32.mrf.mxu0
  %v666 = vadd.f32 %v533, %v665
  %v667 = vpop.f32.mrf.mxu0
  %v668 = vadd.f32 %v535, %v667
  %669 = vmatmul.bf16.gmra.mxu0 %v285
  %v670 = vpop.f32.mrf.mxu0
  %v671 = vadd.f32 %v538, %v670
  %v672 = vpop.f32.mrf.mxu0
  %v673 = vadd.f32 %v540, %v672
  %674 = vmatmul.bf16.gmra.mxu0 %v287
  %v675 = vpop.f32.mrf.mxu0
  %v676 = vadd.f32 %v543, %v675
  %v677 = vpop.f32.mrf.mxu0
  %v678 = vadd.f32 %v545, %v677
  %679 = vmatmul.bf16.gmra.mxu0 %v289
  %v680 = vpop.f32.mrf.mxu0
  %v681 = vadd.f32 %v548, %v680
  %v682 = vpop.f32.mrf.mxu0
  %v683 = vadd.f32 %v550, %v682
  %684 = vmatmul.bf16.gmra.mxu0 %v291
  %v685 = vpop.f32.mrf.mxu0
  %v686 = vadd.f32 %v553, %v685
  %v687 = vpop.f32.mrf.mxu0
  %v688 = vadd.f32 %v555, %v687
  %689 = vmatmul.bf16.gmra.mxu0 %v293
  %v690 = vpop.f32.mrf.mxu0
  %v691 = vadd.f32 %v558, %v690
  %v692 = vpop.f32.mrf.mxu0
  %v693 = vadd.f32 %v560, %v692
  %694 = vmatmul.bf16.gmra.mxu0 %v295
  %v695 = vpop.f32.mrf.mxu0
  %v696 = vadd.f32 %v563, %v695
  %v697 = vpop.f32.mrf.mxu0
  %v698 = vadd.f32 %v565, %v697
  %699 = vmatmul.bf16.gmra.mxu0 %v297
  %v700 = vpop.f32.mrf.mxu0
  %v701 = vadd.f32 %v568, %v700
  %v702 = vpop.f32.mrf.mxu0
  %v703 = vadd.f32 %v570, %v702
  %704 = vmatmul.bf16.gmra.mxu0 %v299
  %v705 = vpop.f32.mrf.mxu0
  %v706 = vadd.f32 %v573, %v705
  %v707 = vpop.f32.mrf.mxu0
  %v708 = vadd.f32 %v575, %v707
  %709 = vmatmul.bf16.gmra.mxu0 %v301
  %v710 = vpop.f32.mrf.mxu0
  %v711 = vadd.f32 %v578, %v710
  %v712 = vpop.f32.mrf.mxu0
  %713 = vdwg.mxu0
  %714 = vadd.xlane.f32.xlu0 %v591
  %v715 = vpop.xlane.xlu0 %714
  %716 = vadd.xlane.f32.xlu0 %v593
  %v717 = vpop.xlane.xlu0 %716
  %718 = vadd.xlane.f32.xlu0 %v596
  %v719 = vpop.xlane.xlu0 %718
  %720 = vadd.xlane.f32.xlu0 %v598
  %v721 = vpop.xlane.xlu0 %720
  %722 = vadd.xlane.f32.xlu0 %v601
  %v723 = vpop.xlane.xlu0 %722
  %724 = vadd.xlane.f32.xlu0 %v603
  %v725 = vpop.xlane.xlu0 %724
  %726 = vadd.xlane.f32.xlu0 %v606
  %v727 = vpop.xlane.xlu0 %726
  %728 = vadd.xlane.f32.xlu0 %v608
  %v729 = vpop.xlane.xlu0 %728
  %730 = vadd.xlane.f32.xlu0 %v611
  %v731 = vpop.xlane.xlu0 %730
  %732 = vadd.xlane.f32.xlu0 %v613
  %v733 = vpop.xlane.xlu0 %732
  %734 = vadd.xlane.f32.xlu0 %v616
  %v735 = vpop.xlane.xlu0 %734
  %736 = vadd.xlane.f32.xlu0 %v618
  %v737 = vpop.xlane.xlu0 %736
  %738 = vadd.xlane.f32.xlu0 %v621
  %v739 = vpop.xlane.xlu0 %738
  %740 = vadd.xlane.f32.xlu0 %v623
  %v741 = vpop.xlane.xlu0 %740
  %742 = vadd.xlane.f32.xlu0 %v626
  %v743 = vpop.xlane.xlu0 %742
  %744 = vadd.xlane.f32.xlu0 %v628
  %v745 = vpop.xlane.xlu0 %744
  %746 = vadd.xlane.f32.xlu0 %v631
  %v747 = vpop.xlane.xlu0 %746
  %748 = vadd.xlane.f32.xlu0 %v633
  %v749 = vpop.xlane.xlu0 %748
  %750 = vadd.xlane.f32.xlu0 %v636
  %v751 = vpop.xlane.xlu0 %750
  %752 = vadd.xlane.f32.xlu0 %v638
  %v753 = vpop.xlane.xlu0 %752
  %754 = vadd.xlane.f32.xlu0 %v641
  %v755 = vpop.xlane.xlu0 %754
  %756 = vadd.xlane.f32.xlu0 %v643
  %v757 = vpop.xlane.xlu0 %756
  %758 = vadd.xlane.f32.xlu0 %v646
  %v759 = vpop.xlane.xlu0 %758
  %760 = vadd.xlane.f32.xlu0 %v648
  %v761 = vpop.xlane.xlu0 %760
  %762 = vadd.xlane.f32.xlu0 %v651
  %v763 = vpop.xlane.xlu0 %762
  %764 = vadd.xlane.f32.xlu0 %v653
  %v765 = vpop.xlane.xlu0 %764
  %766 = vadd.xlane.f32.xlu0 %v656
  %v767 = vpop.xlane.xlu0 %766
  %768 = vadd.xlane.f32.xlu0 %v658
  %v769 = vpop.xlane.xlu0 %768
  %770 = vadd.xlane.f32.xlu0 %v661
  %v771 = vpop.xlane.xlu0 %770
  %772 = vadd.xlane.f32.xlu0 %v663
  %v773 = vpop.xlane.xlu0 %772
  %774 = vadd.xlane.f32.xlu0 %v666
  %v775 = vpop.xlane.xlu0 %774
  %776 = vadd.xlane.f32.xlu0 %v668
  %v777 = vpop.xlane.xlu0 %776
  %778 = vadd.xlane.f32.xlu0 %v671
  %v779 = vpop.xlane.xlu0 %778
  %780 = vadd.xlane.f32.xlu0 %v673
  %v781 = vpop.xlane.xlu0 %780
  %782 = vadd.xlane.f32.xlu0 %v676
  %v783 = vpop.xlane.xlu0 %782
  %784 = vadd.xlane.f32.xlu0 %v678
  %v785 = vpop.xlane.xlu0 %784
  %786 = vadd.xlane.f32.xlu0 %v681
  %v787 = vpop.xlane.xlu0 %786
  %788 = vadd.xlane.f32.xlu0 %v683
  %v789 = vpop.xlane.xlu0 %788
  %790 = vadd.xlane.f32.xlu0 %v686
  %v791 = vpop.xlane.xlu0 %790
  %792 = vadd.xlane.f32.xlu0 %v688
  %v793 = vpop.xlane.xlu0 %792
  %794 = vadd.xlane.f32.xlu0 %v691
  %v795 = vpop.xlane.xlu0 %794
  %796 = vadd.xlane.f32.xlu0 %v693
  %v797 = vpop.xlane.xlu0 %796
  %798 = vadd.xlane.f32.xlu0 %v696
  %v799 = vpop.xlane.xlu0 %798
  %800 = vadd.xlane.f32.xlu0 %v698
  %v801 = vpop.xlane.xlu0 %800
  %802 = vadd.xlane.f32.xlu0 %v701
  %v803 = vpop.xlane.xlu0 %802
  %804 = vadd.xlane.f32.xlu0 %v703
  %v805 = vpop.xlane.xlu0 %804
  %806 = vadd.xlane.f32.xlu0 %v706
  %v807 = vpop.xlane.xlu0 %806
  %808 = vadd.xlane.f32.xlu0 %v708
  %v809 = vpop.xlane.xlu0 %808
  %810 = vadd.xlane.f32.xlu0 %v711
  %v811 = vpop.xlane.xlu0 %810
  %v812 = vmul.f32 %v591, %v591
  %v813 = vmul.f32 %v593, %v593
  %v814 = vmul.f32 %v596, %v596
  %v815 = vmul.f32 %v598, %v598
  %v816 = vmul.f32 %v601, %v601
  %v817 = vmul.f32 %v603, %v603
  %v818 = vmul.f32 %v606, %v606
  %v819 = vmul.f32 %v608, %v608
  %v820 = vmul.f32 %v611, %v611
  %v821 = vmul.f32 %v613, %v613
  %v822 = vmul.f32 %v616, %v616
  %v823 = vmul.f32 %v618, %v618
  %v824 = vmul.f32 %v621, %v621
  %v825 = vmul.f32 %v623, %v623
  %v826 = vmul.f32 %v626, %v626
  %v827 = vmul.f32 %v628, %v628
  %v828 = vmul.f32 %v631, %v631
  %v829 = vmul.f32 %v633, %v633
  %v830 = vmul.f32 %v636, %v636
  %v831 = vmul.f32 %v638, %v638
  %v832 = vmul.f32 %v641, %v641
  %v833 = vmul.f32 %v643, %v643
  %v834 = vmul.f32 %v646, %v646
  %v835 = vmul.f32 %v648, %v648
  %v836 = vmul.f32 %v651, %v651
  %v837 = vmul.f32 %v653, %v653
  %v838 = vmul.f32 %v656, %v656
  %v839 = vmul.f32 %v658, %v658
  %v840 = vmul.f32 %v661, %v661
  %v841 = vmul.f32 %v663, %v663
  %v842 = vmul.f32 %v666, %v666
  %v843 = vmul.f32 %v668, %v668
  %v844 = vmul.f32 %v671, %v671
  %v845 = vmul.f32 %v673, %v673
  %v846 = vmul.f32 %v676, %v676
  %v847 = vmul.f32 %v678, %v678
  %v848 = vmul.f32 %v681, %v681
  %v849 = vmul.f32 %v683, %v683
  %v850 = vmul.f32 %v686, %v686
  %v851 = vmul.f32 %v688, %v688
  %v852 = vmul.f32 %v691, %v691
  %v853 = vmul.f32 %v693, %v693
  %v854 = vmul.f32 %v696, %v696
  %v855 = vmul.f32 %v698, %v698
  %v856 = vmul.f32 %v701, %v701
  %v857 = vmul.f32 %v703, %v703
  %v858 = vmul.f32 %v706, %v706
  %v859 = vmul.f32 %v708, %v708
  %v860 = vmul.f32 %v711, %v711
  %861 = vadd.xlane.f32.xlu0 %v812
  %v862 = vpop.xlane.xlu0 %861
  %863 = vadd.xlane.f32.xlu0 %v813
  %v864 = vpop.xlane.xlu0 %863
  %865 = vadd.xlane.f32.xlu0 %v814
  %v866 = vpop.xlane.xlu0 %865
  %867 = vadd.xlane.f32.xlu0 %v815
  %v868 = vpop.xlane.xlu0 %867
  %869 = vadd.xlane.f32.xlu0 %v816
  %v870 = vpop.xlane.xlu0 %869
  %871 = vadd.xlane.f32.xlu0 %v817
  %v872 = vpop.xlane.xlu0 %871
  %873 = vadd.xlane.f32.xlu0 %v818
  %v874 = vpop.xlane.xlu0 %873
  %875 = vadd.xlane.f32.xlu0 %v819
  %v876 = vpop.xlane.xlu0 %875
  %877 = vadd.xlane.f32.xlu0 %v820
  %v878 = vpop.xlane.xlu0 %877
  %879 = vadd.xlane.f32.xlu0 %v821
  %v880 = vpop.xlane.xlu0 %879
  %881 = vadd.xlane.f32.xlu0 %v822
  %v882 = vpop.xlane.xlu0 %881
  %883 = vadd.xlane.f32.xlu0 %v823
  %v884 = vpop.xlane.xlu0 %883
  %885 = vadd.xlane.f32.xlu0 %v824
  %v886 = vpop.xlane.xlu0 %885
  %887 = vadd.xlane.f32.xlu0 %v825
  %v888 = vpop.xlane.xlu0 %887
  %889 = vadd.xlane.f32.xlu0 %v826
  %v890 = vpop.xlane.xlu0 %889
  %891 = vadd.xlane.f32.xlu0 %v827
  %v892 = vpop.xlane.xlu0 %891
  %893 = vadd.xlane.f32.xlu0 %v828
  %v894 = vpop.xlane.xlu0 %893
  %895 = vadd.xlane.f32.xlu0 %v829
  %v896 = vpop.xlane.xlu0 %895
  %897 = vadd.xlane.f32.xlu0 %v830
  %v898 = vpop.xlane.xlu0 %897
  %899 = vadd.xlane.f32.xlu0 %v831
  %v900 = vpop.xlane.xlu0 %899
  %901 = vadd.xlane.f32.xlu0 %v832
  %v902 = vpop.xlane.xlu0 %901
  %903 = vadd.xlane.f32.xlu0 %v833
  %v904 = vpop.xlane.xlu0 %903
  %905 = vadd.xlane.f32.xlu0 %v834
  %v906 = vpop.xlane.xlu0 %905
  %907 = vadd.xlane.f32.xlu0 %v835
  %v908 = vpop.xlane.xlu0 %907
  %909 = vadd.xlane.f32.xlu0 %v836
  %v910 = vpop.xlane.xlu0 %909
  %911 = vadd.xlane.f32.xlu0 %v837
  %v912 = vpop.xlane.xlu0 %911
  %913 = vadd.xlane.f32.xlu0 %v838
  %v914 = vpop.xlane.xlu0 %913
  %915 = vadd.xlane.f32.xlu0 %v839
  %v916 = vpop.xlane.xlu0 %915
  %917 = vadd.xlane.f32.xlu0 %v840
  %v918 = vpop.xlane.xlu0 %917
  %919 = vadd.xlane.f32.xlu0 %v841
  %v920 = vpop.xlane.xlu0 %919
  %921 = vadd.xlane.f32.xlu0 %v842
  %v922 = vpop.xlane.xlu0 %921
  %923 = vadd.xlane.f32.xlu0 %v843
  %v924 = vpop.xlane.xlu0 %923
  %925 = vadd.xlane.f32.xlu0 %v844
  %v926 = vpop.xlane.xlu0 %925
  %927 = vadd.xlane.f32.xlu0 %v845
  %v928 = vpop.xlane.xlu0 %927
  %929 = vadd.xlane.f32.xlu0 %v846
  %v930 = vpop.xlane.xlu0 %929
  %931 = vadd.xlane.f32.xlu0 %v847
  %v932 = vpop.xlane.xlu0 %931
  %933 = vadd.xlane.f32.xlu0 %v848
  %v934 = vpop.xlane.xlu0 %933
  %935 = vadd.xlane.f32.xlu0 %v849
  %v936 = vpop.xlane.xlu0 %935
  %937 = vadd.xlane.f32.xlu0 %v850
  %v938 = vpop.xlane.xlu0 %937
  %939 = vadd.xlane.f32.xlu0 %v851
  %v940 = vpop.xlane.xlu0 %939
  %941 = vadd.xlane.f32.xlu0 %v852
  %v942 = vpop.xlane.xlu0 %941
  %943 = vadd.xlane.f32.xlu0 %v853
  %v944 = vpop.xlane.xlu0 %943
  %945 = vadd.xlane.f32.xlu0 %v854
  %v946 = vpop.xlane.xlu0 %945
  %947 = vadd.xlane.f32.xlu0 %v855
  %v948 = vpop.xlane.xlu0 %947
  %949 = vadd.xlane.f32.xlu0 %v856
  %v950 = vpop.xlane.xlu0 %949
  %951 = vadd.xlane.f32.xlu0 %v857
  %v952 = vpop.xlane.xlu0 %951
  %953 = vadd.xlane.f32.xlu0 %v858
  %v954 = vpop.xlane.xlu0 %953
  %955 = vadd.xlane.f32.xlu0 %v859
  %v956 = vpop.xlane.xlu0 %955
  %957 = vadd.xlane.f32.xlu0 %v860
  %v958 = vpop.xlane.xlu0 %957
  %v959 = vmul.f32 %v715, 0.0078125
  %v960 = vmul.f32 %v717, 0.0078125
  %v961 = vmul.f32 %v719, 0.0078125
  %v962 = vmul.f32 %v721, 0.0078125
  %v963 = vmul.f32 %v723, 0.0078125
  %v964 = vmul.f32 %v725, 0.0078125
  %v965 = vmul.f32 %v727, 0.0078125
  %v966 = vmul.f32 %v729, 0.0078125
  %v967 = vmul.f32 %v731, 0.0078125
  %v968 = vmul.f32 %v733, 0.0078125
  %v969 = vmul.f32 %v735, 0.0078125
  %v970 = vmul.f32 %v737, 0.0078125
  %v971 = vmul.f32 %v739, 0.0078125
  %v972 = vmul.f32 %v741, 0.0078125
  %v973 = vmul.f32 %v743, 0.0078125
  %v974 = vmul.f32 %v745, 0.0078125
  %v975 = vmul.f32 %v747, 0.0078125
  %v976 = vmul.f32 %v749, 0.0078125
  %v977 = vmul.f32 %v751, 0.0078125
  %v978 = vmul.f32 %v753, 0.0078125
  %v979 = vmul.f32 %v755, 0.0078125
  %v980 = vmul.f32 %v757, 0.0078125
  %v981 = vmul.f32 %v759, 0.0078125
  %v982 = vmul.f32 %v761, 0.0078125
  %v983 = vmul.f32 %v763, 0.0078125
  %v984 = vmul.f32 %v765, 0.0078125
  %v985 = vmul.f32 %v767, 0.0078125
  %v986 = vmul.f32 %v769, 0.0078125
  %v987 = vmul.f32 %v771, 0.0078125
  %v988 = vmul.f32 %v773, 0.0078125
  %v989 = vmul.f32 %v775, 0.0078125
  %v990 = vmul.f32 %v777, 0.0078125
  %v991 = vmul.f32 %v779, 0.0078125
  %v992 = vmul.f32 %v781, 0.0078125
  %v993 = vmul.f32 %v783, 0.0078125
  %v994 = vmul.f32 %v785, 0.0078125
  %v995 = vmul.f32 %v787, 0.0078125
  %v996 = vmul.f32 %v789, 0.0078125
  %v997 = vmul.f32 %v791, 0.0078125
  %v998 = vmul.f32 %v793, 0.0078125
  %v999 = vmul.f32 %v795, 0.0078125
  %v1000 = vmul.f32 %v797, 0.0078125
  %v1001 = vmul.f32 %v799, 0.0078125
  %v1002 = vmul.f32 %v801, 0.0078125
  %v1003 = vmul.f32 %v803, 0.0078125
  %v1004 = vmul.f32 %v805, 0.0078125
  %v1005 = vmul.f32 %v807, 0.0078125
  %v1006 = vmul.f32 %v809, 0.0078125
  %v1007 = vmul.f32 %v811, 0.0078125
  %v1008 = vmul.f32 %v862, 0.0078125
  %v1009 = vmul.f32 %v864, 0.0078125
  %v1010 = vmul.f32 %v866, 0.0078125
  %v1011 = vmul.f32 %v868, 0.0078125
  %v1012 = vmul.f32 %v870, 0.0078125
  %v1013 = vmul.f32 %v872, 0.0078125
  %v1014 = vmul.f32 %v874, 0.0078125
  %v1015 = vmul.f32 %v876, 0.0078125
  %v1016 = vmul.f32 %v878, 0.0078125
  %v1017 = vmul.f32 %v880, 0.0078125
  %v1018 = vmul.f32 %v882, 0.0078125
  %v1019 = vmul.f32 %v884, 0.0078125
  %v1020 = vmul.f32 %v886, 0.0078125
  %v1021 = vmul.f32 %v888, 0.0078125
  %v1022 = vmul.f32 %v890, 0.0078125
  %v1023 = vmul.f32 %v892, 0.0078125
  %v1024 = vmul.f32 %v894, 0.0078125
  %v1025 = vmul.f32 %v896, 0.0078125
  %v1026 = vmul.f32 %v898, 0.0078125
  %v1027 = vmul.f32 %v900, 0.0078125
  %v1028 = vmul.f32 %v902, 0.0078125
  %v1029 = vmul.f32 %v904, 0.0078125
  %v1030 = vmul.f32 %v906, 0.0078125
  %v1031 = vmul.f32 %v908, 0.0078125
  %v1032 = vmul.f32 %v910, 0.0078125
  %v1033 = vmul.f32 %v912, 0.0078125
  %v1034 = vmul.f32 %v914, 0.0078125
  %v1035 = vmul.f32 %v916, 0.0078125
  %v1036 = vmul.f32 %v918, 0.0078125
  %v1037 = vmul.f32 %v920, 0.0078125
  %v1038 = vmul.f32 %v922, 0.0078125
  %v1039 = vmul.f32 %v924, 0.0078125
  %v1040 = vmul.f32 %v926, 0.0078125
  %v1041 = vmul.f32 %v928, 0.0078125
  %v1042 = vmul.f32 %v930, 0.0078125
  %v1043 = vmul.f32 %v932, 0.0078125
  %v1044 = vmul.f32 %v934, 0.0078125
  %v1045 = vmul.f32 %v936, 0.0078125
  %v1046 = vmul.f32 %v938, 0.0078125
  %v1047 = vmul.f32 %v940, 0.0078125
  %v1048 = vmul.f32 %v942, 0.0078125
  %v1049 = vmul.f32 %v944, 0.0078125
  %v1050 = vmul.f32 %v946, 0.0078125
  %v1051 = vmul.f32 %v948, 0.0078125
  %v1052 = vmul.f32 %v950, 0.0078125
  %v1053 = vmul.f32 %v952, 0.0078125
  %v1054 = vmul.f32 %v954, 0.0078125
  %v1055 = vmul.f32 %v956, 0.0078125
  %v1056 = vmul.f32 %v958, 0.0078125
  %v1057 = vmul.f32 %v959, %v959
  %v1058 = vmul.f32 %v960, %v960
  %v1059 = vmul.f32 %v961, %v961
  %v1060 = vmul.f32 %v962, %v962
  %v1061 = vmul.f32 %v963, %v963
  %v1062 = vmul.f32 %v964, %v964
  %v1063 = vmul.f32 %v965, %v965
  %v1064 = vmul.f32 %v966, %v966
  %v1065 = vmul.f32 %v967, %v967
  %v1066 = vmul.f32 %v968, %v968
  %v1067 = vmul.f32 %v969, %v969
  %v1068 = vmul.f32 %v970, %v970
  %v1069 = vmul.f32 %v971, %v971
  %v1070 = vmul.f32 %v972, %v972
  %v1071 = vmul.f32 %v973, %v973
  %v1072 = vmul.f32 %v974, %v974
  %v1073 = vmul.f32 %v975, %v975
  %v1074 = vmul.f32 %v976, %v976
  %v1075 = vmul.f32 %v977, %v977
  %v1076 = vmul.f32 %v978, %v978
  %v1077 = vmul.f32 %v979, %v979
  %v1078 = vmul.f32 %v980, %v980
  %v1079 = vmul.f32 %v981, %v981
  %v1080 = vmul.f32 %v982, %v982
  %v1081 = vmul.f32 %v983, %v983
  %v1082 = vmul.f32 %v984, %v984
  %v1083 = vmul.f32 %v985, %v985
  %v1084 = vmul.f32 %v986, %v986
  %v1085 = vmul.f32 %v987, %v987
  %v1086 = vmul.f32 %v988, %v988
  %v1087 = vmul.f32 %v989, %v989
  %v1088 = vmul.f32 %v990, %v990
  %v1089 = vmul.f32 %v991, %v991
  %v1090 = vmul.f32 %v992, %v992
  %v1091 = vmul.f32 %v993, %v993
  %v1092 = vmul.f32 %v994, %v994
  %v1093 = vmul.f32 %v995, %v995
  %v1094 = vmul.f32 %v996, %v996
  %v1095 = vmul.f32 %v997, %v997
  %v1096 = vmul.f32 %v998, %v998
  %v1097 = vmul.f32 %v999, %v999
  %v1098 = vmul.f32 %v1000, %v1000
  %v1099 = vmul.f32 %v1001, %v1001
  %v1100 = vmul.f32 %v1002, %v1002
  %v1101 = vmul.f32 %v1003, %v1003
  %v1102 = vmul.f32 %v1004, %v1004
  %v1103 = vmul.f32 %v1005, %v1005
  %v1104 = vmul.f32 %v1006, %v1006
  %v1105 = vmul.f32 %v1007, %v1007
  %v1106 = vsub.f32 %v1008, %v1057
  %v1107 = vsub.f32 %v1009, %v1058
  %v1108 = vsub.f32 %v1010, %v1059
  %v1109 = vsub.f32 %v1011, %v1060
  %v1110 = vsub.f32 %v1012, %v1061
  %v1111 = vsub.f32 %v1013, %v1062
  %v1112 = vsub.f32 %v1014, %v1063
  %v1113 = vsub.f32 %v1015, %v1064
  %v1114 = vsub.f32 %v1016, %v1065
  %v1115 = vsub.f32 %v1017, %v1066
  %v1116 = vsub.f32 %v1018, %v1067
  %v1117 = vsub.f32 %v1019, %v1068
  %v1118 = vsub.f32 %v1020, %v1069
  %v1119 = vsub.f32 %v1021, %v1070
  %v1120 = vsub.f32 %v1022, %v1071
  %v1121 = vsub.f32 %v1023, %v1072
  %v1122 = vsub.f32 %v1024, %v1073
  %v1123 = vsub.f32 %v1025, %v1074
  %v1124 = vsub.f32 %v1026, %v1075
  %v1125 = vsub.f32 %v1027, %v1076
  %v1126 = vsub.f32 %v1028, %v1077
  %v1127 = vsub.f32 %v1029, %v1078
  %v1128 = vsub.f32 %v1030, %v1079
  %v1129 = vsub.f32 %v1031, %v1080
  %v1130 = vsub.f32 %v1032, %v1081
  %v1131 = vsub.f32 %v1033, %v1082
  %v1132 = vsub.f32 %v1034, %v1083
  %v1133 = vsub.f32 %v1035, %v1084
  %v1134 = vsub.f32 %v1036, %v1085
  %v1135 = vsub.f32 %v1037, %v1086
  %v1136 = vsub.f32 %v1038, %v1087
  %v1137 = vsub.f32 %v1039, %v1088
  %v1138 = vsub.f32 %v1040, %v1089
  %v1139 = vsub.f32 %v1041, %v1090
  %v1140 = vsub.f32 %v1042, %v1091
  %v1141 = vsub.f32 %v1043, %v1092
  %v1142 = vsub.f32 %v1044, %v1093
  %v1143 = vsub.f32 %v1045, %v1094
  %v1144 = vsub.f32 %v1046, %v1095
  %v1145 = vsub.f32 %v1047, %v1096
  %v1146 = vsub.f32 %v1048, %v1097
  %v1147 = vsub.f32 %v1049, %v1098
  %v1148 = vsub.f32 %v1050, %v1099
  %v1149 = vsub.f32 %v1051, %v1100
  %v1150 = vsub.f32 %v1052, %v1101
  %v1151 = vsub.f32 %v1053, %v1102
  %v1152 = vsub.f32 %v1054, %v1103
  %v1153 = vsub.f32 %v1055, %v1104
  %v1154 = vsub.f32 %v1056, %v1105
  %v1155 = vsub.f32 %v591, %v959
  %v1156 = vsub.f32 %v593, %v960
  %v1157 = vsub.f32 %v596, %v961
  %v1158 = vsub.f32 %v598, %v962
  %v1159 = vsub.f32 %v601, %v963
  %v1160 = vsub.f32 %v603, %v964
  %v1161 = vsub.f32 %v606, %v965
  %v1162 = vsub.f32 %v608, %v966
  %v1163 = vsub.f32 %v611, %v967
  %v1164 = vsub.f32 %v613, %v968
  %v1165 = vsub.f32 %v616, %v969
  %v1166 = vsub.f32 %v618, %v970
  %v1167 = vsub.f32 %v621, %v971
  %v1168 = vsub.f32 %v623, %v972
  %v1169 = vsub.f32 %v626, %v973
  %v1170 = vsub.f32 %v628, %v974
  %v1171 = vsub.f32 %v631, %v975
  %v1172 = vsub.f32 %v633, %v976
  %v1173 = vsub.f32 %v636, %v977
  %v1174 = vsub.f32 %v638, %v978
  %v1175 = vsub.f32 %v641, %v979
  %v1176 = vsub.f32 %v643, %v980
  %v1177 = vsub.f32 %v646, %v981
  %v1178 = vsub.f32 %v648, %v982
  %v1179 = vsub.f32 %v651, %v983
  %v1180 = vsub.f32 %v653, %v984
  %v1181 = vsub.f32 %v656, %v985
  %v1182 = vsub.f32 %v658, %v986
  %v1183 = vsub.f32 %v661, %v987
  %v1184 = vsub.f32 %v663, %v988
  %v1185 = vsub.f32 %v666, %v989
  %v1186 = vsub.f32 %v668, %v990
  %v1187 = vsub.f32 %v671, %v991
  %v1188 = vsub.f32 %v673, %v992
  %v1189 = vsub.f32 %v676, %v993
  %v1190 = vsub.f32 %v678, %v994
  %v1191 = vsub.f32 %v681, %v995
  %v1192 = vsub.f32 %v683, %v996
  %v1193 = vsub.f32 %v686, %v997
  %v1194 = vsub.f32 %v688, %v998
  %v1195 = vsub.f32 %v691, %v999
  %v1196 = vsub.f32 %v693, %v1000
  %v1197 = vsub.f32 %v696, %v1001
  %v1198 = vsub.f32 %v698, %v1002
  %v1199 = vsub.f32 %v701, %v1003
  %v1200 = vsub.f32 %v703, %v1004
  %v1201 = vsub.f32 %v706, %v1005
  %v1202 = vsub.f32 %v708, %v1006
  %v1203 = vsub.f32 %v711, %v1007
  %v1204 = vadd.f32 %v1106, 1e-05
  %v1205 = vadd.f32 %v1107, 1e-05
  %v1206 = vadd.f32 %v1108, 1e-05
  %v1207 = vadd.f32 %v1109, 1e-05
  %v1208 = vadd.f32 %v1110, 1e-05
  %v1209 = vadd.f32 %v1111, 1e-05
  %v1210 = vadd.f32 %v1112, 1e-05
  %v1211 = vadd.f32 %v1113, 1e-05
  %v1212 = vadd.f32 %v1114, 1e-05
  %v1213 = vadd.f32 %v1115, 1e-05
  %v1214 = vadd.f32 %v1116, 1e-05
  %v1215 = vadd.f32 %v1117, 1e-05
  %v1216 = vadd.f32 %v1118, 1e-05
  %v1217 = vadd.f32 %v1119, 1e-05
  %v1218 = vadd.f32 %v1120, 1e-05
  %v1219 = vadd.f32 %v1121, 1e-05
  %v1220 = vadd.f32 %v1122, 1e-05
  %v1221 = vadd.f32 %v1123, 1e-05
  %v1222 = vadd.f32 %v1124, 1e-05
  %v1223 = vadd.f32 %v1125, 1e-05
  %v1224 = vadd.f32 %v1126, 1e-05
  %v1225 = vadd.f32 %v1127, 1e-05
  %v1226 = vadd.f32 %v1128, 1e-05
  %v1227 = vadd.f32 %v1129, 1e-05
  %v1228 = vadd.f32 %v1130, 1e-05
  %v1229 = vadd.f32 %v1131, 1e-05
  %v1230 = vadd.f32 %v1132, 1e-05
  %v1231 = vadd.f32 %v1133, 1e-05
  %v1232 = vadd.f32 %v1134, 1e-05
  %v1233 = vadd.f32 %v1135, 1e-05
  %v1234 = vadd.f32 %v1136, 1e-05
  %v1235 = vadd.f32 %v1137, 1e-05
  %v1236 = vadd.f32 %v1138, 1e-05
  %v1237 = vadd.f32 %v1139, 1e-05
  %v1238 = vadd.f32 %v1140, 1e-05
  %v1239 = vadd.f32 %v1141, 1e-05
  %v1240 = vadd.f32 %v1142, 1e-05
  %v1241 = vadd.f32 %v1143, 1e-05
  %v1242 = vadd.f32 %v1144, 1e-05
  %v1243 = vadd.f32 %v1145, 1e-05
  %v1244 = vadd.f32 %v1146, 1e-05
  %v1245 = vadd.f32 %v1147, 1e-05
  %v1246 = vadd.f32 %v1148, 1e-05
  %v1247 = vadd.f32 %v1149, 1e-05
  %v1248 = vadd.f32 %v1150, 1e-05
  %v1249 = vadd.f32 %v1151, 1e-05
  %v1250 = vadd.f32 %v1152, 1e-05
  %v1251 = vadd.f32 %v1153, 1e-05
  %v1252 = vadd.f32 %v1154, 1e-05
  %v1253 = vrsqrt.pop %v1204
  %v1254 = vmul.f32 %v1253, %v1204
  %v1255 = vmul.f32 %v1254, %v1253
  %v1256 = vmul.f32 0.5, %v1255
  %v1257 = vsub.f32 1.5, %v1256
  %v1258 = vmul.f32 %v1253, %v1257
  %vm1259 = vweird.f32 %v1204
  %vm1260 = vweird.f32 %v1253
  %vm1261 = vmor %vm1259, %vm1260
  %v1262 = vsel %vm1261, %v1253, %v1258
  %v1263 = vrsqrt.pop %v1205
  %v1264 = vmul.f32 %v1263, %v1205
  %v1265 = vmul.f32 %v1264, %v1263
  %v1266 = vmul.f32 0.5, %v1265
  %v1267 = vsub.f32 1.5, %v1266
  %v1268 = vmul.f32 %v1263, %v1267
  %vm1269 = vweird.f32 %v1205
  %vm1270 = vweird.f32 %v1263
  %vm1271 = vmor %vm1269, %vm1270
  %v1272 = vsel %vm1271, %v1263, %v1268
  %v1273 = vrsqrt.pop %v1206
  %v1274 = vmul.f32 %v1273, %v1206
  %v1275 = vmul.f32 %v1274, %v1273
  %v1276 = vmul.f32 0.5, %v1275
  %v1277 = vsub.f32 1.5, %v1276
  %v1278 = vmul.f32 %v1273, %v1277
  %vm1279 = vweird.f32 %v1206
  %vm1280 = vweird.f32 %v1273
  %vm1281 = vmor %vm1279, %vm1280
  %v1282 = vsel %vm1281, %v1273, %v1278
  %v1283 = vrsqrt.pop %v1207
  %v1284 = vmul.f32 %v1283, %v1207
  %v1285 = vmul.f32 %v1284, %v1283
  %v1286 = vmul.f32 0.5, %v1285
  %v1287 = vsub.f32 1.5, %v1286
  %v1288 = vmul.f32 %v1283, %v1287
  %vm1289 = vweird.f32 %v1207
  %vm1290 = vweird.f32 %v1283
  %vm1291 = vmor %vm1289, %vm1290
  %v1292 = vsel %vm1291, %v1283, %v1288
  %v1293 = vrsqrt.pop %v1208
  %v1294 = vmul.f32 %v1293, %v1208
  %v1295 = vmul.f32 %v1294, %v1293
  %v1296 = vmul.f32 0.5, %v1295
  %v1297 = vsub.f32 1.5, %v1296
  %v1298 = vmul.f32 %v1293, %v1297
  %vm1299 = vweird.f32 %v1208
  %vm1300 = vweird.f32 %v1293
  %vm1301 = vmor %vm1299, %vm1300
  %v1302 = vsel %vm1301, %v1293, %v1298
  %v1303 = vrsqrt.pop %v1209
  %v1304 = vmul.f32 %v1303, %v1209
  %v1305 = vmul.f32 %v1304, %v1303
  %v1306 = vmul.f32 0.5, %v1305
  %v1307 = vsub.f32 1.5, %v1306
  %v1308 = vmul.f32 %v1303, %v1307
  %vm1309 = vweird.f32 %v1209
  %vm1310 = vweird.f32 %v1303
  %vm1311 = vmor %vm1309, %vm1310
  %v1312 = vsel %vm1311, %v1303, %v1308
  %v1313 = vrsqrt.pop %v1210
  %v1314 = vmul.f32 %v1313, %v1210
  %v1315 = vmul.f32 %v1314, %v1313
  %v1316 = vmul.f32 0.5, %v1315
  %v1317 = vsub.f32 1.5, %v1316
  %v1318 = vmul.f32 %v1313, %v1317
  %vm1319 = vweird.f32 %v1210
  %vm1320 = vweird.f32 %v1313
  %vm1321 = vmor %vm1319, %vm1320
  %v1322 = vsel %vm1321, %v1313, %v1318
  %v1323 = vrsqrt.pop %v1211
  %v1324 = vmul.f32 %v1323, %v1211
  %v1325 = vmul.f32 %v1324, %v1323
  %v1326 = vmul.f32 0.5, %v1325
  %v1327 = vsub.f32 1.5, %v1326
  %v1328 = vmul.f32 %v1323, %v1327
  %vm1329 = vweird.f32 %v1211
  %vm1330 = vweird.f32 %v1323
  %vm1331 = vmor %vm1329, %vm1330
  %v1332 = vsel %vm1331, %v1323, %v1328
  %v1333 = vrsqrt.pop %v1212
  %v1334 = vmul.f32 %v1333, %v1212
  %v1335 = vmul.f32 %v1334, %v1333
  %v1336 = vmul.f32 0.5, %v1335
  %v1337 = vsub.f32 1.5, %v1336
  %v1338 = vmul.f32 %v1333, %v1337
  %vm1339 = vweird.f32 %v1212
  %vm1340 = vweird.f32 %v1333
  %vm1341 = vmor %vm1339, %vm1340
  %v1342 = vsel %vm1341, %v1333, %v1338
  %v1343 = vrsqrt.pop %v1213
  %v1344 = vmul.f32 %v1343, %v1213
  %v1345 = vmul.f32 %v1344, %v1343
  %v1346 = vmul.f32 0.5, %v1345
  %v1347 = vsub.f32 1.5, %v1346
  %v1348 = vmul.f32 %v1343, %v1347
  %vm1349 = vweird.f32 %v1213
  %vm1350 = vweird.f32 %v1343
  %vm1351 = vmor %vm1349, %vm1350
  %v1352 = vsel %vm1351, %v1343, %v1348
  %v1353 = vrsqrt.pop %v1214
  %v1354 = vmul.f32 %v1353, %v1214
  %v1355 = vmul.f32 %v1354, %v1353
  %v1356 = vmul.f32 0.5, %v1355
  %v1357 = vsub.f32 1.5, %v1356
  %v1358 = vmul.f32 %v1353, %v1357
  %vm1359 = vweird.f32 %v1214
  %vm1360 = vweird.f32 %v1353
  %vm1361 = vmor %vm1359, %vm1360
  %v1362 = vsel %vm1361, %v1353, %v1358
  %v1363 = vrsqrt.pop %v1215
  %v1364 = vmul.f32 %v1363, %v1215
  %v1365 = vmul.f32 %v1364, %v1363
  %v1366 = vmul.f32 0.5, %v1365
  %v1367 = vsub.f32 1.5, %v1366
  %v1368 = vmul.f32 %v1363, %v1367
  %vm1369 = vweird.f32 %v1215
  %vm1370 = vweird.f32 %v1363
  %vm1371 = vmor %vm1369, %vm1370
  %v1372 = vsel %vm1371, %v1363, %v1368
  %v1373 = vrsqrt.pop %v1216
  %v1374 = vmul.f32 %v1373, %v1216
  %v1375 = vmul.f32 %v1374, %v1373
  %v1376 = vmul.f32 0.5, %v1375
  %v1377 = vsub.f32 1.5, %v1376
  %v1378 = vmul.f32 %v1373, %v1377
  %vm1379 = vweird.f32 %v1216
  %vm1380 = vweird.f32 %v1373
  %vm1381 = vmor %vm1379, %vm1380
  %v1382 = vsel %vm1381, %v1373, %v1378
  %v1383 = vrsqrt.pop %v1217
  %v1384 = vmul.f32 %v1383, %v1217
  %v1385 = vmul.f32 %v1384, %v1383
  %v1386 = vmul.f32 0.5, %v1385
  %v1387 = vsub.f32 1.5, %v1386
  %v1388 = vmul.f32 %v1383, %v1387
  %vm1389 = vweird.f32 %v1217
  %vm1390 = vweird.f32 %v1383
  %vm1391 = vmor %vm1389, %vm1390
  %v1392 = vsel %vm1391, %v1383, %v1388
  %v1393 = vrsqrt.pop %v1218
  %v1394 = vmul.f32 %v1393, %v1218
  %v1395 = vmul.f32 %v1394, %v1393
  %v1396 = vmul.f32 0.5, %v1395
  %v1397 = vsub.f32 1.5, %v1396
  %v1398 = vmul.f32 %v1393, %v1397
  %vm1399 = vweird.f32 %v1218
  %vm1400 = vweird.f32 %v1393
  %vm1401 = vmor %vm1399, %vm1400
  %v1402 = vsel %vm1401, %v1393, %v1398
  %v1403 = vrsqrt.pop %v1219
  %v1404 = vmul.f32 %v1403, %v1219
  %v1405 = vmul.f32 %v1404, %v1403
  %v1406 = vmul.f32 0.5, %v1405
  %v1407 = vsub.f32 1.5, %v1406
  %v1408 = vmul.f32 %v1403, %v1407
  %vm1409 = vweird.f32 %v1219
  %vm1410 = vweird.f32 %v1403
  %vm1411 = vmor %vm1409, %vm1410
  %v1412 = vsel %vm1411, %v1403, %v1408
  %v1413 = vrsqrt.pop %v1220
  %v1414 = vmul.f32 %v1413, %v1220
  %v1415 = vmul.f32 %v1414, %v1413
  %v1416 = vmul.f32 0.5, %v1415
  %v1417 = vsub.f32 1.5, %v1416
  %v1418 = vmul.f32 %v1413, %v1417
  %vm1419 = vweird.f32 %v1220
  %vm1420 = vweird.f32 %v1413
  %vm1421 = vmor %vm1419, %vm1420
  %v1422 = vsel %vm1421, %v1413, %v1418
  %v1423 = vrsqrt.pop %v1221
  %v1424 = vmul.f32 %v1423, %v1221
  %v1425 = vmul.f32 %v1424, %v1423
  %v1426 = vmul.f32 0.5, %v1425
  %v1427 = vsub.f32 1.5, %v1426
  %v1428 = vmul.f32 %v1423, %v1427
  %vm1429 = vweird.f32 %v1221
  %vm1430 = vweird.f32 %v1423
  %vm1431 = vmor %vm1429, %vm1430
  %v1432 = vsel %vm1431, %v1423, %v1428
  %v1433 = vrsqrt.pop %v1222
  %v1434 = vmul.f32 %v1433, %v1222
  %v1435 = vmul.f32 %v1434, %v1433
  %v1436 = vmul.f32 0.5, %v1435
  %v1437 = vsub.f32 1.5, %v1436
  %v1438 = vmul.f32 %v1433, %v1437
  %vm1439 = vweird.f32 %v1222
  %vm1440 = vweird.f32 %v1433
  %vm1441 = vmor %vm1439, %vm1440
  %v1442 = vsel %vm1441, %v1433, %v1438
  %v1443 = vrsqrt.pop %v1223
  %v1444 = vmul.f32 %v1443, %v1223
  %v1445 = vmul.f32 %v1444, %v1443
  %v1446 = vmul.f32 0.5, %v1445
  %v1447 = vsub.f32 1.5, %v1446
  %v1448 = vmul.f32 %v1443, %v1447
  %vm1449 = vweird.f32 %v1223
  %vm1450 = vweird.f32 %v1443
  %vm1451 = vmor %vm1449, %vm1450
  %v1452 = vsel %vm1451, %v1443, %v1448
  %v1453 = vrsqrt.pop %v1224
  %v1454 = vmul.f32 %v1453, %v1224
  %v1455 = vmul.f32 %v1454, %v1453
  %v1456 = vmul.f32 0.5, %v1455
  %v1457 = vsub.f32 1.5, %v1456
  %v1458 = vmul.f32 %v1453, %v1457
  %vm1459 = vweird.f32 %v1224
  %vm1460 = vweird.f32 %v1453
  %vm1461 = vmor %vm1459, %vm1460
  %v1462 = vsel %vm1461, %v1453, %v1458
  %v1463 = vrsqrt.pop %v1225
  %v1464 = vmul.f32 %v1463, %v1225
  %v1465 = vmul.f32 %v1464, %v1463
  %v1466 = vmul.f32 0.5, %v1465
  %v1467 = vsub.f32 1.5, %v1466
  %v1468 = vmul.f32 %v1463, %v1467
  %vm1469 = vweird.f32 %v1225
  %vm1470 = vweird.f32 %v1463
  %vm1471 = vmor %vm1469, %vm1470
  %v1472 = vsel %vm1471, %v1463, %v1468
  %v1473 = vrsqrt.pop %v1226
  %v1474 = vmul.f32 %v1473, %v1226
  %v1475 = vmul.f32 %v1474, %v1473
  %v1476 = vmul.f32 0.5, %v1475
  %v1477 = vsub.f32 1.5, %v1476
  %v1478 = vmul.f32 %v1473, %v1477
  %vm1479 = vweird.f32 %v1226
  %vm1480 = vweird.f32 %v1473
  %vm1481 = vmor %vm1479, %vm1480
  %v1482 = vsel %vm1481, %v1473, %v1478
  %v1483 = vrsqrt.pop %v1227
  %v1484 = vmul.f32 %v1483, %v1227
  %v1485 = vmul.f32 %v1484, %v1483
  %v1486 = vmul.f32 0.5, %v1485
  %v1487 = vsub.f32 1.5, %v1486
  %v1488 = vmul.f32 %v1483, %v1487
  %vm1489 = vweird.f32 %v1227
  %vm1490 = vweird.f32 %v1483
  %vm1491 = vmor %vm1489, %vm1490
  %v1492 = vsel %vm1491, %v1483, %v1488
  %v1493 = vrsqrt.pop %v1228
  %v1494 = vmul.f32 %v1493, %v1228
  %v1495 = vmul.f32 %v1494, %v1493
  %v1496 = vmul.f32 0.5, %v1495
  %v1497 = vsub.f32 1.5, %v1496
  %v1498 = vmul.f32 %v1493, %v1497
  %vm1499 = vweird.f32 %v1228
  %vm1500 = vweird.f32 %v1493
  %vm1501 = vmor %vm1499, %vm1500
  %v1502 = vsel %vm1501, %v1493, %v1498
  %v1503 = vrsqrt.pop %v1229
  %v1504 = vmul.f32 %v1503, %v1229
  %v1505 = vmul.f32 %v1504, %v1503
  %v1506 = vmul.f32 0.5, %v1505
  %v1507 = vsub.f32 1.5, %v1506
  %v1508 = vmul.f32 %v1503, %v1507
  %vm1509 = vweird.f32 %v1229
  %vm1510 = vweird.f32 %v1503
  %vm1511 = vmor %vm1509, %vm1510
  %v1512 = vsel %vm1511, %v1503, %v1508
  %v1513 = vrsqrt.pop %v1230
  %v1514 = vmul.f32 %v1513, %v1230
  %v1515 = vmul.f32 %v1514, %v1513
  %v1516 = vmul.f32 0.5, %v1515
  %v1517 = vsub.f32 1.5, %v1516
  %v1518 = vmul.f32 %v1513, %v1517
  %vm1519 = vweird.f32 %v1230
  %vm1520 = vweird.f32 %v1513
  %vm1521 = vmor %vm1519, %vm1520
  %v1522 = vsel %vm1521, %v1513, %v1518
  %v1523 = vrsqrt.pop %v1231
  %v1524 = vmul.f32 %v1523, %v1231
  %v1525 = vmul.f32 %v1524, %v1523
  %v1526 = vmul.f32 0.5, %v1525
  %v1527 = vsub.f32 1.5, %v1526
  %v1528 = vmul.f32 %v1523, %v1527
  %vm1529 = vweird.f32 %v1231
  %vm1530 = vweird.f32 %v1523
  %vm1531 = vmor %vm1529, %vm1530
  %v1532 = vsel %vm1531, %v1523, %v1528
  %v1533 = vrsqrt.pop %v1232
  %v1534 = vmul.f32 %v1533, %v1232
  %v1535 = vmul.f32 %v1534, %v1533
  %v1536 = vmul.f32 0.5, %v1535
  %v1537 = vsub.f32 1.5, %v1536
  %v1538 = vmul.f32 %v1533, %v1537
  %vm1539 = vweird.f32 %v1232
  %vm1540 = vweird.f32 %v1533
  %vm1541 = vmor %vm1539, %vm1540
  %v1542 = vsel %vm1541, %v1533, %v1538
  %v1543 = vrsqrt.pop %v1233
  %v1544 = vmul.f32 %v1543, %v1233
  %v1545 = vmul.f32 %v1544, %v1543
  %v1546 = vmul.f32 0.5, %v1545
  %v1547 = vsub.f32 1.5, %v1546
  %v1548 = vmul.f32 %v1543, %v1547
  %vm1549 = vweird.f32 %v1233
  %vm1550 = vweird.f32 %v1543
  %vm1551 = vmor %vm1549, %vm1550
  %v1552 = vsel %vm1551, %v1543, %v1548
  %v1553 = vrsqrt.pop %v1234
  %v1554 = vmul.f32 %v1553, %v1234
  %v1555 = vmul.f32 %v1554, %v1553
  %v1556 = vmul.f32 0.5, %v1555
  %v1557 = vsub.f32 1.5, %v1556
  %v1558 = vmul.f32 %v1553, %v1557
  %vm1559 = vweird.f32 %v1234
  %vm1560 = vweird.f32 %v1553
  %vm1561 = vmor %vm1559, %vm1560
  %v1562 = vsel %vm1561, %v1553, %v1558
  %v1563 = vrsqrt.pop %v1235
  %v1564 = vmul.f32 %v1563, %v1235
  %v1565 = vmul.f32 %v1564, %v1563
  %v1566 = vmul.f32 0.5, %v1565
  %v1567 = vsub.f32 1.5, %v1566
  %v1568 = vmul.f32 %v1563, %v1567
  %vm1569 = vweird.f32 %v1235
  %vm1570 = vweird.f32 %v1563
  %vm1571 = vmor %vm1569, %vm1570
  %v1572 = vsel %vm1571, %v1563, %v1568
  %v1573 = vrsqrt.pop %v1236
  %v1574 = vmul.f32 %v1573, %v1236
  %v1575 = vmul.f32 %v1574, %v1573
  %v1576 = vmul.f32 0.5, %v1575
  %v1577 = vsub.f32 1.5, %v1576
  %v1578 = vmul.f32 %v1573, %v1577
  %vm1579 = vweird.f32 %v1236
  %vm1580 = vweird.f32 %v1573
  %vm1581 = vmor %vm1579, %vm1580
  %v1582 = vsel %vm1581, %v1573, %v1578
  %v1583 = vrsqrt.pop %v1237
  %v1584 = vmul.f32 %v1583, %v1237
  %v1585 = vmul.f32 %v1584, %v1583
  %v1586 = vmul.f32 0.5, %v1585
  %v1587 = vsub.f32 1.5, %v1586
  %v1588 = vmul.f32 %v1583, %v1587
  %vm1589 = vweird.f32 %v1237
  %vm1590 = vweird.f32 %v1583
  %vm1591 = vmor %vm1589, %vm1590
  %v1592 = vsel %vm1591, %v1583, %v1588
  %v1593 = vrsqrt.pop %v1238
  %v1594 = vmul.f32 %v1593, %v1238
  %v1595 = vmul.f32 %v1594, %v1593
  %v1596 = vmul.f32 0.5, %v1595
  %v1597 = vsub.f32 1.5, %v1596
  %v1598 = vmul.f32 %v1593, %v1597
  %vm1599 = vweird.f32 %v1238
  %vm1600 = vweird.f32 %v1593
  %vm1601 = vmor %vm1599, %vm1600
  %v1602 = vsel %vm1601, %v1593, %v1598
  %v1603 = vrsqrt.pop %v1239
  %v1604 = vmul.f32 %v1603, %v1239
  %v1605 = vmul.f32 %v1604, %v1603
  %v1606 = vmul.f32 0.5, %v1605
  %v1607 = vsub.f32 1.5, %v1606
  %v1608 = vmul.f32 %v1603, %v1607
  %vm1609 = vweird.f32 %v1239
  %vm1610 = vweird.f32 %v1603
  %vm1611 = vmor %vm1609, %vm1610
  %v1612 = vsel %vm1611, %v1603, %v1608
  %v1613 = vrsqrt.pop %v1240
  %v1614 = vmul.f32 %v1613, %v1240
  %v1615 = vmul.f32 %v1614, %v1613
  %v1616 = vmul.f32 0.5, %v1615
  %v1617 = vsub.f32 1.5, %v1616
  %v1618 = vmul.f32 %v1613, %v1617
  %vm1619 = vweird.f32 %v1240
  %vm1620 = vweird.f32 %v1613
  %vm1621 = vmor %vm1619, %vm1620
  %v1622 = vsel %vm1621, %v1613, %v1618
  %v1623 = vrsqrt.pop %v1241
  %v1624 = vmul.f32 %v1623, %v1241
  %v1625 = vmul.f32 %v1624, %v1623
  %v1626 = vmul.f32 0.5, %v1625
  %v1627 = vsub.f32 1.5, %v1626
  %v1628 = vmul.f32 %v1623, %v1627
  %vm1629 = vweird.f32 %v1241
  %vm1630 = vweird.f32 %v1623
  %vm1631 = vmor %vm1629, %vm1630
  %v1632 = vsel %vm1631, %v1623, %v1628
  %v1633 = vrsqrt.pop %v1242
  %v1634 = vmul.f32 %v1633, %v1242
  %v1635 = vmul.f32 %v1634, %v1633
  %v1636 = vmul.f32 0.5, %v1635
  %v1637 = vsub.f32 1.5, %v1636
  %v1638 = vmul.f32 %v1633, %v1637
  %vm1639 = vweird.f32 %v1242
  %vm1640 = vweird.f32 %v1633
  %vm1641 = vmor %vm1639, %vm1640
  %v1642 = vsel %vm1641, %v1633, %v1638
  %v1643 = vrsqrt.pop %v1243
  %v1644 = vmul.f32 %v1643, %v1243
  %v1645 = vmul.f32 %v1644, %v1643
  %v1646 = vmul.f32 0.5, %v1645
  %v1647 = vsub.f32 1.5, %v1646
  %v1648 = vmul.f32 %v1643, %v1647
  %vm1649 = vweird.f32 %v1243
  %vm1650 = vweird.f32 %v1643
  %vm1651 = vmor %vm1649, %vm1650
  %v1652 = vsel %vm1651, %v1643, %v1648
  %v1653 = vrsqrt.pop %v1244
  %v1654 = vmul.f32 %v1653, %v1244
  %v1655 = vmul.f32 %v1654, %v1653
  %v1656 = vmul.f32 0.5, %v1655
  %v1657 = vsub.f32 1.5, %v1656
  %v1658 = vmul.f32 %v1653, %v1657
  %vm1659 = vweird.f32 %v1244
  %vm1660 = vweird.f32 %v1653
  %vm1661 = vmor %vm1659, %vm1660
  %v1662 = vsel %vm1661, %v1653, %v1658
  %v1663 = vrsqrt.pop %v1245
  %v1664 = vmul.f32 %v1663, %v1245
  %v1665 = vmul.f32 %v1664, %v1663
  %v1666 = vmul.f32 0.5, %v1665
  %v1667 = vsub.f32 1.5, %v1666
  %v1668 = vmul.f32 %v1663, %v1667
  %vm1669 = vweird.f32 %v1245
  %vm1670 = vweird.f32 %v1663
  %vm1671 = vmor %vm1669, %vm1670
  %v1672 = vsel %vm1671, %v1663, %v1668
  %v1673 = vrsqrt.pop %v1246
  %v1674 = vmul.f32 %v1673, %v1246
  %v1675 = vmul.f32 %v1674, %v1673
  %v1676 = vmul.f32 0.5, %v1675
  %v1677 = vsub.f32 1.5, %v1676
  %v1678 = vmul.f32 %v1673, %v1677
  %vm1679 = vweird.f32 %v1246
  %vm1680 = vweird.f32 %v1673
  %vm1681 = vmor %vm1679, %vm1680
  %v1682 = vsel %vm1681, %v1673, %v1678
  %v1683 = vrsqrt.pop %v1247
  %v1684 = vmul.f32 %v1683, %v1247
  %v1685 = vmul.f32 %v1684, %v1683
  %v1686 = vmul.f32 0.5, %v1685
  %v1687 = vsub.f32 1.5, %v1686
  %v1688 = vmul.f32 %v1683, %v1687
  %vm1689 = vweird.f32 %v1247
  %vm1690 = vweird.f32 %v1683
  %vm1691 = vmor %vm1689, %vm1690
  %v1692 = vsel %vm1691, %v1683, %v1688
  %v1693 = vrsqrt.pop %v1248
  %v1694 = vmul.f32 %v1693, %v1248
  %v1695 = vmul.f32 %v1694, %v1693
  %v1696 = vmul.f32 0.5, %v1695
  %v1697 = vsub.f32 1.5, %v1696
  %v1698 = vmul.f32 %v1693, %v1697
  %vm1699 = vweird.f32 %v1248
  %vm1700 = vweird.f32 %v1693
  %vm1701 = vmor %vm1699, %vm1700
  %v1702 = vsel %vm1701, %v1693, %v1698
  %v1703 = vrsqrt.pop %v1249
  %v1704 = vmul.f32 %v1703, %v1249
  %v1705 = vmul.f32 %v1704, %v1703
  %v1706 = vmul.f32 0.5, %v1705
  %v1707 = vsub.f32 1.5, %v1706
  %v1708 = vmul.f32 %v1703, %v1707
  %vm1709 = vweird.f32 %v1249
  %vm1710 = vweird.f32 %v1703
  %vm1711 = vmor %vm1709, %vm1710
  %v1712 = vsel %vm1711, %v1703, %v1708
  %v1713 = vrsqrt.pop %v1250
  %v1714 = vmul.f32 %v1713, %v1250
  %v1715 = vmul.f32 %v1714, %v1713
  %v1716 = vmul.f32 0.5, %v1715
  %v1717 = vsub.f32 1.5, %v1716
  %v1718 = vmul.f32 %v1713, %v1717
  %vm1719 = vweird.f32 %v1250
  %vm1720 = vweird.f32 %v1713
  %vm1721 = vmor %vm1719, %vm1720
  %v1722 = vsel %vm1721, %v1713, %v1718
  %v1723 = vrsqrt.pop %v1251
  %v1724 = vmul.f32 %v1723, %v1251
  %v1725 = vmul.f32 %v1724, %v1723
  %v1726 = vmul.f32 0.5, %v1725
  %v1727 = vsub.f32 1.5, %v1726
  %v1728 = vmul.f32 %v1723, %v1727
  %vm1729 = vweird.f32 %v1251
  %vm1730 = vweird.f32 %v1723
  %vm1731 = vmor %vm1729, %vm1730
  %v1732 = vsel %vm1731, %v1723, %v1728
  %v1733 = vrsqrt.pop %v1252
  %v1734 = vmul.f32 %v1733, %v1252
  %v1735 = vmul.f32 %v1734, %v1733
  %v1736 = vmul.f32 0.5, %v1735
  %v1737 = vsub.f32 1.5, %v1736
  %v1738 = vmul.f32 %v1733, %v1737
  %vm1739 = vweird.f32 %v1252
  %vm1740 = vweird.f32 %v1733
  %vm1741 = vmor %vm1739, %vm1740
  %v1742 = vsel %vm1741, %v1733, %v1738
  %v1743 = vmul.f32 %v1155, %v1262
  %v1744 = vmul.f32 %v1156, %v1272
  %v1745 = vmul.f32 %v1157, %v1282
  %v1746 = vmul.f32 %v1158, %v1292
  %v1747 = vmul.f32 %v1159, %v1302
  %v1748 = vmul.f32 %v1160, %v1312
  %v1749 = vmul.f32 %v1161, %v1322
  %v1750 = vmul.f32 %v1162, %v1332
  %v1751 = vmul.f32 %v1163, %v1342
  %v1752 = vmul.f32 %v1164, %v1352
  %v1753 = vmul.f32 %v1165, %v1362
  %v1754 = vmul.f32 %v1166, %v1372
  %v1755 = vmul.f32 %v1167, %v1382
  %v1756 = vmul.f32 %v1168, %v1392
  %v1757 = vmul.f32 %v1169, %v1402
  %v1758 = vmul.f32 %v1170, %v1412
  %v1759 = vmul.f32 %v1171, %v1422
  %v1760 = vmul.f32 %v1172, %v1432
  %v1761 = vmul.f32 %v1173, %v1442
  %v1762 = vmul.f32 %v1174, %v1452
  %v1763 = vmul.f32 %v1175, %v1462
  %v1764 = vmul.f32 %v1176, %v1472
  %v1765 = vmul.f32 %v1177, %v1482
  %v1766 = vmul.f32 %v1178, %v1492
  %v1767 = vmul.f32 %v1179, %v1502
  %v1768 = vmul.f32 %v1180, %v1512
  %v1769 = vmul.f32 %v1181, %v1522
  %v1770 = vmul.f32 %v1182, %v1532
  %v1771 = vmul.f32 %v1183, %v1542
  %v1772 = vmul.f32 %v1184, %v1552
  %v1773 = vmul.f32 %v1185, %v1562
  %v1774 = vmul.f32 %v1186, %v1572
  %v1775 = vmul.f32 %v1187, %v1582
  %v1776 = vmul.f32 %v1188, %v1592
  %v1777 = vmul.f32 %v1189, %v1602
  %v1778 = vmul.f32 %v1190, %v1612
  %v1779 = vmul.f32 %v1191, %v1622
  %v1780 = vmul.f32 %v1192, %v1632
  %v1781 = vmul.f32 %v1193, %v1642
  %v1782 = vmul.f32 %v1194, %v1652
  %v1783 = vmul.f32 %v1195, %v1662
  %v1784 = vmul.f32 %v1196, %v1672
  %v1785 = vmul.f32 %v1197, %v1682
  %v1786 = vmul.f32 %v1198, %v1692
  %v1787 = vmul.f32 %v1199, %v1702
  %v1788 = vmul.f32 %v1200, %v1712
  %v1789 = vmul.f32 %v1201, %v1722
  %v1790 = vmul.f32 %v1202, %v1732
  %v1791 = vmul.f32 %v1203, %v1742
  %v1792 = vld [vmem:[%s3] sm:$0x1]
  %v1794 = vperm.slane %v1792, 0
  %v1796 = vmul.f32 %v1743, %v1794
  %v1797 = vmul.f32 %v1744, %v1794
  %v1798 = vmul.f32 %v1745, %v1794
  %v1799 = vmul.f32 %v1746, %v1794
  %v1800 = vmul.f32 %v1747, %v1794
  %v1801 = vmul.f32 %v1748, %v1794
  %v1802 = vmul.f32 %v1749, %v1794
  %v1803 = vmul.f32 %v1750, %v1794
  %v1804 = vmul.f32 %v1751, %v1794
  %v1805 = vmul.f32 %v1752, %v1794
  %v1806 = vmul.f32 %v1753, %v1794
  %v1807 = vmul.f32 %v1754, %v1794
  %v1808 = vmul.f32 %v1755, %v1794
  %v1809 = vmul.f32 %v1756, %v1794
  %v1810 = vmul.f32 %v1757, %v1794
  %v1811 = vmul.f32 %v1758, %v1794
  %v1812 = vmul.f32 %v1759, %v1794
  %v1813 = vmul.f32 %v1760, %v1794
  %v1814 = vmul.f32 %v1761, %v1794
  %v1815 = vmul.f32 %v1762, %v1794
  %v1816 = vmul.f32 %v1763, %v1794
  %v1817 = vmul.f32 %v1764, %v1794
  %v1818 = vmul.f32 %v1765, %v1794
  %v1819 = vmul.f32 %v1766, %v1794
  %v1820 = vmul.f32 %v1767, %v1794
  %v1821 = vmul.f32 %v1768, %v1794
  %v1822 = vmul.f32 %v1769, %v1794
  %v1823 = vmul.f32 %v1770, %v1794
  %v1824 = vmul.f32 %v1771, %v1794
  %v1825 = vmul.f32 %v1772, %v1794
  %v1826 = vmul.f32 %v1773, %v1794
  %v1827 = vmul.f32 %v1774, %v1794
  %v1828 = vmul.f32 %v1775, %v1794
  %v1829 = vmul.f32 %v1776, %v1794
  %v1830 = vmul.f32 %v1777, %v1794
  %v1831 = vmul.f32 %v1778, %v1794
  %v1832 = vmul.f32 %v1779, %v1794
  %v1833 = vmul.f32 %v1780, %v1794
  %v1834 = vmul.f32 %v1781, %v1794
  %v1835 = vmul.f32 %v1782, %v1794
  %v1836 = vmul.f32 %v1783, %v1794
  %v1837 = vmul.f32 %v1784, %v1794
  %v1838 = vmul.f32 %v1785, %v1794
  %v1839 = vmul.f32 %v1786, %v1794
  %v1840 = vmul.f32 %v1787, %v1794
  %v1841 = vmul.f32 %v1788, %v1794
  %v1842 = vmul.f32 %v1789, %v1794
  %v1843 = vmul.f32 %v1790, %v1794
  %v1844 = vmul.f32 %v1791, %v1794
  %v1845 = vld [vmem:[%s4] sm:$0x1]
  %v1847 = vperm.slane %v1845, 0
  %v1849 = vadd.f32 %v1796, %v1847
  %v1850 = vadd.f32 %v1797, %v1847
  %v1851 = vadd.f32 %v1798, %v1847
  %v1852 = vadd.f32 %v1799, %v1847
  %v1853 = vadd.f32 %v1800, %v1847
  %v1854 = vadd.f32 %v1801, %v1847
  %v1855 = vadd.f32 %v1802, %v1847
  %v1856 = vadd.f32 %v1803, %v1847
  %v1857 = vadd.f32 %v1804, %v1847
  %v1858 = vadd.f32 %v1805, %v1847
  %v1859 = vadd.f32 %v1806, %v1847
  %v1860 = vadd.f32 %v1807, %v1847
  %v1861 = vadd.f32 %v1808, %v1847
  %v1862 = vadd.f32 %v1809, %v1847
  %v1863 = vadd.f32 %v1810, %v1847
  %v1864 = vadd.f32 %v1811, %v1847
  %v1865 = vadd.f32 %v1812, %v1847
  %v1866 = vadd.f32 %v1813, %v1847
  %v1867 = vadd.f32 %v1814, %v1847
  %v1868 = vadd.f32 %v1815, %v1847
  %v1869 = vadd.f32 %v1816, %v1847
  %v1870 = vadd.f32 %v1817, %v1847
  %v1871 = vadd.f32 %v1818, %v1847
  %v1872 = vadd.f32 %v1819, %v1847
  %v1873 = vadd.f32 %v1820, %v1847
  %v1874 = vadd.f32 %v1821, %v1847
  %v1875 = vadd.f32 %v1822, %v1847
  %v1876 = vadd.f32 %v1823, %v1847
  %v1877 = vadd.f32 %v1824, %v1847
  %v1878 = vadd.f32 %v1825, %v1847
  %v1879 = vadd.f32 %v1826, %v1847
  %v1880 = vadd.f32 %v1827, %v1847
  %v1881 = vadd.f32 %v1828, %v1847
  %v1882 = vadd.f32 %v1829, %v1847
  %v1883 = vadd.f32 %v1830, %v1847
  %v1884 = vadd.f32 %v1831, %v1847
  %v1885 = vadd.f32 %v1832, %v1847
  %v1886 = vadd.f32 %v1833, %v1847
  %v1887 = vadd.f32 %v1834, %v1847
  %v1888 = vadd.f32 %v1835, %v1847
  %v1889 = vadd.f32 %v1836, %v1847
  %v1890 = vadd.f32 %v1837, %v1847
  %v1891 = vadd.f32 %v1838, %v1847
  %v1892 = vadd.f32 %v1839, %v1847
  %v1893 = vadd.f32 %v1840, %v1847
  %v1894 = vadd.f32 %v1841, %v1847
  %v1895 = vadd.f32 %v1842, %v1847
  %v1896 = vadd.f32 %v1843, %v1847
  %v1897 = vadd.f32 %v1844, %v1847
  %v1898 = vpack.c.bf16 %v1849, %v1849
  %v1899 = vpack.c.bf16 %v1850, %v1850
  %v1900 = vpack.c.bf16 %v1851, %v1851
  %v1901 = vpack.c.bf16 %v1852, %v1852
  %v1902 = vpack.c.bf16 %v1853, %v1853
  %v1903 = vpack.c.bf16 %v1854, %v1854
  %v1904 = vpack.c.bf16 %v1855, %v1855
  %v1905 = vpack.c.bf16 %v1856, %v1856
  %v1906 = vpack.c.bf16 %v1857, %v1857
  %v1907 = vpack.c.bf16 %v1858, %v1858
  %v1908 = vpack.c.bf16 %v1859, %v1859
  %v1909 = vpack.c.bf16 %v1860, %v1860
  %v1910 = vpack.c.bf16 %v1861, %v1861
  %v1911 = vpack.c.bf16 %v1862, %v1862
  %v1912 = vpack.c.bf16 %v1863, %v1863
  %v1913 = vpack.c.bf16 %v1864, %v1864
  %v1914 = vpack.c.bf16 %v1865, %v1865
  %v1915 = vpack.c.bf16 %v1866, %v1866
  %v1916 = vpack.c.bf16 %v1867, %v1867
  %v1917 = vpack.c.bf16 %v1868, %v1868
  %v1918 = vpack.c.bf16 %v1869, %v1869
  %v1919 = vpack.c.bf16 %v1870, %v1870
  %v1920 = vpack.c.bf16 %v1871, %v1871
  %v1921 = vpack.c.bf16 %v1872, %v1872
  %v1922 = vpack.c.bf16 %v1873, %v1873
  %v1923 = vpack.c.bf16 %v1874, %v1874
  %v1924 = vpack.c.bf16 %v1875, %v1875
  %v1925 = vpack.c.bf16 %v1876, %v1876
  %v1926 = vpack.c.bf16 %v1877, %v1877
  %v1927 = vpack.c.bf16 %v1878, %v1878
  %v1928 = vpack.c.bf16 %v1879, %v1879
  %v1929 = vpack.c.bf16 %v1880, %v1880
  %v1930 = vpack.c.bf16 %v1881, %v1881
  %v1931 = vpack.c.bf16 %v1882, %v1882
  %v1932 = vpack.c.bf16 %v1883, %v1883
  %v1933 = vpack.c.bf16 %v1884, %v1884
  %v1934 = vpack.c.bf16 %v1885, %v1885
  %v1935 = vpack.c.bf16 %v1886, %v1886
  %v1936 = vpack.c.bf16 %v1887, %v1887
  %v1937 = vpack.c.bf16 %v1888, %v1888
  %v1938 = vpack.c.bf16 %v1889, %v1889
  %v1939 = vpack.c.bf16 %v1890, %v1890
  %v1940 = vpack.c.bf16 %v1891, %v1891
  %v1941 = vpack.c.bf16 %v1892, %v1892
  %v1942 = vpack.c.bf16 %v1893, %v1893
  %v1943 = vpack.c.bf16 %v1894, %v1894
  %v1944 = vpack.c.bf16 %v1895, %v1895
  %v1945 = vpack.c.bf16 %v1896, %v1896
  %v1946 = vpack.c.bf16 %v1897, %v1897
  %1947 = vst [vmem:[%s5] sm:$0xf] %v1898
  %1948 = vst [vmem:[%s5 + $0x4] sm:$0xf] %v1899
  %1949 = vst [vmem:[%s5 + $0x8] sm:$0xf] %v1900
  %1950 = vst [vmem:[%s5 + $0xc] sm:$0xf] %v1901
  %1951 = vst [vmem:[%s5 + $0x10] sm:$0xf] %v1902
  %1952 = vst [vmem:[%s5 + $0x14] sm:$0xf] %v1903
  %1953 = vst [vmem:[%s5 + $0x18] sm:$0xf] %v1904
  %1954 = vst [vmem:[%s5 + $0x1c] sm:$0xf] %v1905
  %1955 = vst [vmem:[%s5 + $0x20] sm:$0xf] %v1906
  %1956 = vst [vmem:[%s5 + $0x24] sm:$0xf] %v1907
  %1957 = vst [vmem:[%s5 + $0x28] sm:$0xf] %v1908
  %1958 = vst [vmem:[%s5 + $0x2c] sm:$0xf] %v1909
  %1959 = vst [vmem:[%s5 + $0x30] sm:$0xf] %v1910
  %1960 = vst [vmem:[%s5 + $0x34] sm:$0xf] %v1911
  %1961 = vst [vmem:[%s5 + $0x38] sm:$0xf] %v1912
  %1962 = vst [vmem:[%s5 + $0x3c] sm:$0xf] %v1913
  %1963 = vst [vmem:[%s5 + $0x40] sm:$0xf] %v1914
  %1964 = vst [vmem:[%s5 + $0x44] sm:$0xf] %v1915
  %1965 = vst [vmem:[%s5 + $0x48] sm:$0xf] %v1916
  %1966 = vst [vmem:[%s5 + $0x4c] sm:$0xf] %v1917
  %1967 = vst [vmem:[%s5 + $0x50] sm:$0xf] %v1918
  %1968 = vst [vmem:[%s5 + $0x54] sm:$0xf] %v1919
  %1969 = vst [vmem:[%s5 + $0x58] sm:$0xf] %v1920
  %1970 = vst [vmem:[%s5 + $0x5c] sm:$0xf] %v1921
  %1971 = vst [vmem:[%s5 + $0x60] sm:$0xf] %v1922
  %1972 = vst [vmem:[%s5 + $0x64] sm:$0xf] %v1923
  %1973 = vst [vmem:[%s5 + $0x68] sm:$0xf] %v1924
  %1974 = vst [vmem:[%s5 + $0x6c] sm:$0xf] %v1925
  %1975 = vst [vmem:[%s5 + $0x70] sm:$0xf] %v1926
  %1976 = vst [vmem:[%s5 + $0x74] sm:$0xf] %v1927
  %1977 = vst [vmem:[%s5 + $0x78] sm:$0xf] %v1928
  %1978 = vst [vmem:[%s5 + $0x7c] sm:$0xf] %v1929
  %1979 = vst [vmem:[%s5 + $0x80] sm:$0xf] %v1930
  %1980 = vst [vmem:[%s5 + $0x84] sm:$0xf] %v1931
  %1981 = vst [vmem:[%s5 + $0x88] sm:$0xf] %v1932
  %1982 = vst [vmem:[%s5 + $0x8c] sm:$0xf] %v1933
  %1983 = vst [vmem:[%s5 + $0x90] sm:$0xf] %v1934
  %1984 = vst [vmem:[%s5 + $0x94] sm:$0xf] %v1935
  %1985 = vst [vmem:[%s5 + $0x98] sm:$0xf] %v1936
  %1986 = vst [vmem:[%s5 + $0x9c] sm:$0xf] %v1937
  %1987 = vst [vmem:[%s5 + $0xa0] sm:$0xf] %v1938
  %1988 = vst [vmem:[%s5 + $0xa4] sm:$0xf] %v1939
  %1989 = vst [vmem:[%s5 + $0xa8] sm:$0xf] %v1940
  %1990 = vst [vmem:[%s5 + $0xac] sm:$0xf] %v1941
  %1991 = vst [vmem:[%s5 + $0xb0] sm:$0xf] %v1942
  %1992 = vst [vmem:[%s5 + $0xb4] sm:$0xf] %v1943
  %1993 = vst [vmem:[%s5 + $0xb8] sm:$0xf] %v1944
  %1994 = vst [vmem:[%s5 + $0xbc] sm:$0xf] %v1945
  %1995 = vst [vmem:[%s5 + $0xc0] sm:$0xf] %v1946
  // Predicated region
  $region22: #{swin_breast_cancer_forward.2} parent=0 // pred_check
    _
  $region23: #{swin_breast_cancer_forward.2} parent=0 // pred_check_branch
    %1997 = sbr.rel (0) target = $region25
  $region24: #{swin_breast_cancer_forward.2} parent=0 // pred_region
    _
  $region25: #{swin_breast_cancer_forward.2} parent=0 // pred_fallthru
    _
  // Predicated region
  $region26: #{swin_breast_cancer_forward.2} parent=0 // pred_check
    _
  $region27: #{swin_breast_cancer_forward.2} parent=0 // pred_check_branch
    %1999 = sbr.rel (0) target = $region29
  $region28: #{swin_breast_cancer_forward.2} parent=0 // pred_region
    _
  $region29: #{swin_breast_cancer_forward.2} parent=0 // pred_fallthru
    _

// kernel: swin_breast_cancer_forward.3
$region0: #{swin_breast_cancer_forward.3}
  #allocation0 [shape = 'u32[]', space=smem, size = 0x4, offset = 0x4, fixed_abs, tag = 'smem constant byte address 0x4 - core index']
  #allocation1 [shape = 'u32[72,128]{1,0:T(1,128)}', space=vmem, size = 0x9000, scoped, tag = 'internal scratch']
  %s0 = inlined_call_operand.vmem [shape: bf16[4,196], index: 0, kind: input, shape index: {}]
  %s1 = inlined_call_operand.vmem [shape: bf16[2,196,128], index: 1, kind: input, shape index: {}]
  %s2 = inlined_call_operand.vmem [shape: f32[2,128], index: 2, kind: input, shape index: {}]
  %s3 = inlined_call_operand.vmem [shape: f32[2], index: 3, kind: input, shape index: {}]
  %s4 = inlined_call_operand.vmem [shape: f32[2,128], index: 4, kind: input, shape index: {}]
  %s5 = inlined_call_operand.vmem [shape: f32[1,2], index: 5, kind: input, shape index: {}]
  %s6 = inlined_call_operand.hbm [shape: f32[2,1,2], index: 6, kind: output, shape index: {}]
  %s7 = sld [smem:[#allocation0]]
  $region61: #{swin_breast_cancer_forward.3} parent=0
    _
  %s9 = ssub.s32 1, %s7
  %s10 = scalar_select 0, %s9, %s7
  $region1: #{swin_breast_cancer_forward.3} parent=0
    #allocation2 [shape = 'u8[512]{0}', space=smem, size = 0x200, scoped, tag = 'input window, operand 3, single buffered']
    #allocation3 [shape = 's32[2]{0}', space=sflag, size = 0x8, scoped, tag = 'scoped memory for swin_breast_cancer_forward.3']
    #allocation4 [shape = 's32[2]{0}', space=sflag, size = 0x8, scoped, tag = 'scoped memory for swin_breast_cancer_forward.3']
    #allocation5 [shape = 'u8[1024]{0}', space=vmem, size = 0x400, scoped, tag = 'output window, operand 0']
    %11 = vsyncpa [#allocation4], 0
    %12 = vsyncpa [#allocation3], 0
    %s13 = scalar_lea.sflag [#allocation3], 1
    %14 = vsyncpa %s13, 0
    loop: start=0, step=1, limit=4
    $region2: #{swin_breast_cancer_forward.3} parent=1 // loop_pre_header
      _
    $region3: #{swin_breast_cancer_forward.3} parent=1 // loop_header
      %s16 = sphi 0, %s20
      %p17 = scmp.ge.s32.totalorder %s16, 4
      %s24 = sphi 0, %s24
      %s26 = sphi 0, %s24
      %s27 = sphi 0, %s26
      %s41 = sphi 0, %s27
      %s47 = sphi 0, %s49
      %s50 = sphi 0, %s47
      %s51 = sphi 0, %s50
      %s67 = sphi 0, %s51
      %s71 = sphi 0, %s71
      %s73 = sphi 0, %s71
      %s74 = sphi 0, %s73
      %s88 = sphi 0, %s74
      %s92 = sphi 0, %s92
      %s94 = sphi 0, %s92
      %s95 = sphi 0, %s94
      %s109 = sphi 0, %s95
      %s113 = sphi 0, %s113
      %s115 = sphi 0, %s113
      %s116 = sphi 0, %s115
      %s130 = sphi 0, %s116
      %s134 = sphi 0, %s134
      %s136 = sphi 0, %s134
      %s137 = sphi 0, %s136
      %s151 = sphi 0, %s137
      %s157 = sphi 0, %s159
      %s160 = sphi 0, %s157
      %s161 = sphi 0, %s160
      %s177 = sphi 0, %s161
    $region4: #{swin_breast_cancer_forward.3} parent=1 // loop_header_branch
      %19 = sbr.rel (%p17) target = $region8
    $region5: #{swin_breast_cancer_forward.3} parent=1 // loop_body
      %s21 = ssub.s32 %s16, 1
      %s22 = ssub.s32 %s16, 2
      %s23 = sadd.s32 %s16, 1
      %s25 = sadd.s32 %s24, 1
      %p28 = scmp.eq.s32.totalorder %s16, 1
      %p29 = scmp.ne.s32.totalorder %s24, %s26
      %p30 = scmp.eq.s32.totalorder %s16, 0
      %p31 = por %p29, %p30
      %p32 = scmp.ne.s32.totalorder %s24, %s26
      %p33 = scmp.eq.s32.totalorder %s21, 1
      %p34 = por %p32, %p33
      %p35 = scmp.ne.s32.totalorder %s26, %s27
      %p36 = scmp.eq.s32.totalorder %s21, 0
      %p37 = por %p35, %p36
      %p38 = scmp.ne.s32.totalorder %s26, %s27
      %p39 = scmp.eq.s32.totalorder %s22, 1
      %p40 = por %p38, %p39
      %p42 = scmp.ne.s32.totalorder %s27, %s41
      %p43 = scmp.eq.s32.totalorder %s22, 0
      %p44 = por %p42, %p43
      %s45 = ssub.s32 %s16, %s23
      %p46 = scmp.eq.s32.totalorder %s45, 0
      %s48 = sadd.s32 %s47, 1
      %s49 = scalar_select %p46, %s47, %s48
      %p52 = pneg %p46
      %p53 = scmp.eq.s32.totalorder %s16, 1
      %p54 = por %p52, %p53
      %p55 = scmp.ne.s32.totalorder %s47, %s50
      %p56 = scmp.eq.s32.totalorder %s16, 0
      %p57 = por %p55, %p56
      %p58 = scmp.ne.s32.totalorder %s47, %s50
      %p59 = scmp.eq.s32.totalorder %s21, 1
      %p60 = por %p58, %p59
      %p61 = scmp.ne.s32.totalorder %s50, %s51
      %p62 = scmp.eq.s32.totalorder %s21, 0
      %p63 = por %p61, %p62
      %p64 = scmp.ne.s32.totalorder %s50, %s51
      %p65 = scmp.eq.s32.totalorder %s22, 1
      %p66 = por %p64, %p65
      %p68 = scmp.ne.s32.totalorder %s51, %s67
      %p69 = scmp.eq.s32.totalorder %s22, 0
      %p70 = por %p68, %p69
      %s72 = sadd.s32 %s71, 1
      %p75 = scmp.eq.s32.totalorder %s16, 1
      %p76 = scmp.ne.s32.totalorder %s71, %s73
      %p77 = scmp.eq.s32.totalorder %s16, 0
      %p78 = por %p76, %p77
      %p79 = scmp.ne.s32.totalorder %s71, %s73
      %p80 = scmp.eq.s32.totalorder %s21, 1
      %p81 = por %p79, %p80
      %p82 = scmp.ne.s32.totalorder %s73, %s74
      %p83 = scmp.eq.s32.totalorder %s21, 0
      %p84 = por %p82, %p83
      %p85 = scmp.ne.s32.totalorder %s73, %s74
      %p86 = scmp.eq.s32.totalorder %s22, 1
      %p87 = por %p85, %p86
      %p89 = scmp.ne.s32.totalorder %s74, %s88
      %p90 = scmp.eq.s32.totalorder %s22, 0
      %p91 = por %p89, %p90
      %s93 = sadd.s32 %s92, 1
      %p96 = scmp.eq.s32.totalorder %s16, 1
      %p97 = scmp.ne.s32.totalorder %s92, %s94
      %p98 = scmp.eq.s32.totalorder %s16, 0
      %p99 = por %p97, %p98
      %p100 = scmp.ne.s32.totalorder %s92, %s94
      %p101 = scmp.eq.s32.totalorder %s21, 1
      %p102 = por %p100, %p101
      %p103 = scmp.ne.s32.totalorder %s94, %s95
      %p104 = scmp.eq.s32.totalorder %s21, 0
      %p105 = por %p103, %p104
      %p106 = scmp.ne.s32.totalorder %s94, %s95
      %p107 = scmp.eq.s32.totalorder %s22, 1
      %p108 = por %p106, %p107
      %p110 = scmp.ne.s32.totalorder %s95, %s109
      %p111 = scmp.eq.s32.totalorder %s22, 0
      %p112 = por %p110, %p111
      %s114 = sadd.s32 %s113, 1
      %p117 = scmp.eq.s32.totalorder %s16, 1
      %p118 = scmp.ne.s32.totalorder %s113, %s115
      %p119 = scmp.eq.s32.totalorder %s16, 0
      %p120 = por %p118, %p119
      %p121 = scmp.ne.s32.totalorder %s113, %s115
      %p122 = scmp.eq.s32.totalorder %s21, 1
      %p123 = por %p121, %p122
      %p124 = scmp.ne.s32.totalorder %s115, %s116
      %p125 = scmp.eq.s32.totalorder %s21, 0
      %p126 = por %p124, %p125
      %p127 = scmp.ne.s32.totalorder %s115, %s116
      %p128 = scmp.eq.s32.totalorder %s22, 1
      %p129 = por %p127, %p128
      %p131 = scmp.ne.s32.totalorder %s116, %s130
      %p132 = scmp.eq.s32.totalorder %s22, 0
      %p133 = por %p131, %p132
      %s135 = sadd.s32 %s134, 1
      %p138 = scmp.eq.s32.totalorder %s16, 1
      %p139 = scmp.ne.s32.totalorder %s134, %s136
      %p140 = scmp.eq.s32.totalorder %s16, 0
      %p141 = por %p139, %p140
      %p142 = scmp.ne.s32.totalorder %s134, %s136
      %p143 = scmp.eq.s32.totalorder %s21, 1
      %p144 = por %p142, %p143
      %p145 = scmp.ne.s32.totalorder %s136, %s137
      %p146 = scmp.eq.s32.totalorder %s21, 0
      %p147 = por %p145, %p146
      %p148 = scmp.ne.s32.totalorder %s136, %s137
      %p149 = scmp.eq.s32.totalorder %s22, 1
      %p150 = por %p148, %p149
      %p152 = scmp.ne.s32.totalorder %s137, %s151
      %p153 = scmp.eq.s32.totalorder %s22, 0
      %p154 = por %p152, %p153
      %s155 = ssub.s32 %s16, %s23
      %p156 = scmp.eq.s32.totalorder %s155, 0
      %s158 = sadd.s32 %s157, 1
      %s159 = scalar_select %p156, %s157, %s158
      %p162 = pneg %p156
      %p163 = scmp.eq.s32.totalorder %s16, 1
      %p164 = por %p162, %p163
      %p165 = scmp.ne.s32.totalorder %s157, %s160
      %p166 = scmp.eq.s32.totalorder %s16, 0
      %p167 = por %p165, %p166
      %p168 = scmp.ne.s32.totalorder %s157, %s160
      %p169 = scmp.eq.s32.totalorder %s21, 1
      %p170 = por %p168, %p169
      %p171 = scmp.ne.s32.totalorder %s160, %s161
      %p172 = scmp.eq.s32.totalorder %s21, 0
      %p173 = por %p171, %p172
      %p174 = scmp.ne.s32.totalorder %s160, %s161
      %p175 = scmp.eq.s32.totalorder %s22, 1
      %p176 = por %p174, %p175
      %p178 = scmp.ne.s32.totalorder %s161, %s177
      %p179 = scmp.eq.s32.totalorder %s22, 0
      %p180 = por %p178, %p179
      %p181 = scmp.le.s32.totalorder 1, %s16
      %p182 = scmp.lt.s32.totalorder %s16, 3
      %p183 = pnand %p181, %p182
      %p184 = pneg %p183
      // Predicated region
      $region9: #{swin_breast_cancer_forward.3} parent=5 // pred_check
        _
      $region10: #{swin_breast_cancer_forward.3} parent=5 // pred_check_branch
        %186 = sbr.rel (%p183) target = $region12
      $region11: #{swin_breast_cancer_forward.3} parent=5 // pred_region
        %s187 = ssub.s32 %s16, 1
        // Predicated region
        $region13: #{swin_breast_cancer_forward.3} parent=11 // pred_check
          %p188 = pneg %p37
        $region14: #{swin_breast_cancer_forward.3} parent=11 // pred_check_branch
          %190 = sbr.rel (%p188) target = $region16
        $region15: #{swin_breast_cancer_forward.3} parent=11 // pred_region
          _
        $region16: #{swin_breast_cancer_forward.3} parent=11 // pred_fallthru
          _
        // Predicated region
        $region17: #{swin_breast_cancer_forward.3} parent=11 // pred_check
          %p191 = pneg %p84
        $region18: #{swin_breast_cancer_forward.3} parent=11 // pred_check_branch
          %193 = sbr.rel (%p191) target = $region20
        $region19: #{swin_breast_cancer_forward.3} parent=11 // pred_region
          _
        $region20: #{swin_breast_cancer_forward.3} parent=11 // pred_fallthru
          _
        // Predicated region
        $region21: #{swin_breast_cancer_forward.3} parent=11 // pred_check
          %p194 = pneg %p105
        $region22: #{swin_breast_cancer_forward.3} parent=11 // pred_check_branch
          %196 = sbr.rel (%p194) target = $region24
        $region23: #{swin_breast_cancer_forward.3} parent=11 // pred_region
          %198 = vsyncadd [#allocation4], 0
          %s200 = sshll.u32 %s3, 4
          %s201 = int_to_ptr.vmem [resolvable:$true] %s200
          %203 = dma.vmem_to_smem %s201, 16, [#allocation2], [#allocation4]
        $region24: #{swin_breast_cancer_forward.3} parent=11 // pred_fallthru
          _
        // Predicated region
        $region25: #{swin_breast_cancer_forward.3} parent=11 // pred_check
          %p204 = pneg %p126
        $region26: #{swin_breast_cancer_forward.3} parent=11 // pred_check_branch
          %206 = sbr.rel (%p204) target = $region28
        $region27: #{swin_breast_cancer_forward.3} parent=11 // pred_region
          _
        $region28: #{swin_breast_cancer_forward.3} parent=11 // pred_fallthru
          _
        // Predicated region
        $region29: #{swin_breast_cancer_forward.3} parent=11 // pred_check
          %p207 = pneg %p147
        $region30: #{swin_breast_cancer_forward.3} parent=11 // pred_check_branch
          %209 = sbr.rel (%p207) target = $region32
        $region31: #{swin_breast_cancer_forward.3} parent=11 // pred_region
          _
        $region32: #{swin_breast_cancer_forward.3} parent=11 // pred_fallthru
          _
      $region12: #{swin_breast_cancer_forward.3} parent=5 // pred_fallthru
        _
      %p210 = scmp.lt.s32.totalorder %s16, 2
      // Predicated region
      $region33: #{swin_breast_cancer_forward.3} parent=5 // pred_check
        %p211 = pneg %p210
      $region34: #{swin_breast_cancer_forward.3} parent=5 // pred_check_branch
        %213 = sbr.rel (%p211) target = $region36
      $region35: #{swin_breast_cancer_forward.3} parent=5 // pred_region
        // Predicated region
        $region37: #{swin_breast_cancer_forward.3} parent=35 // pred_check
          %p214 = pneg %p57
        $region38: #{swin_breast_cancer_forward.3} parent=35 // pred_check_branch
          %216 = sbr.rel (%p214) target = $region40
        $region39: #{swin_breast_cancer_forward.3} parent=35 // pred_region
          %p217 = scmp.lt.s32.totalorder %s16, 1
          %s218 = scalar_select %p217, %s16, 1
          %s219 = smul.addr %s218, 25
          %s220 = smul.addr %s219, 4
          %s221 = scalar_lea.vmem %s1, %s220
        $region40: #{swin_breast_cancer_forward.3} parent=35 // pred_fallthru
          _
      $region36: #{swin_breast_cancer_forward.3} parent=5 // pred_fallthru
        _
      %p222 = scmp.le.s32.totalorder 1, %s16
      %p223 = scmp.lt.s32.totalorder %s16, 3
      %p224 = pnand %p222, %p223
      %p225 = pneg %p224
      // Predicated region
      $region41: #{swin_breast_cancer_forward.3} parent=5 // pred_check
        _
      $region42: #{swin_breast_cancer_forward.3} parent=5 // pred_check_branch
        %227 = sbr.rel (%p224) target = $region44
      $region43: #{swin_breast_cancer_forward.3} parent=5 // pred_region
        %s228 = ssub.s32 %s16, 1
        // Predicated region
        $region45: #{swin_breast_cancer_forward.3} parent=43 // pred_check
          %p229 = pneg %p105
        $region46: #{swin_breast_cancer_forward.3} parent=43 // pred_check_branch
          %231 = sbr.rel (%p229) target = $region48
        $region47: #{swin_breast_cancer_forward.3} parent=43 // pred_region
          %233 = dma.done [#allocation4], 16
        $region48: #{swin_breast_cancer_forward.3} parent=43 // pred_fallthru
          _
        %234 = sfence
        %p235 = pneg %p37
        %p236 = pneg %p34
        %p237 = scmp.lt.s32.totalorder %s21, 1
        %s238 = scalar_select %p237, %s21, 1
        %s239 = smul.addr %s238, 25
        %s240 = smul.addr %s239, 4
        %s241 = scalar_lea.vmem %s1, %s240
        %p242 = pneg %p63
        %p243 = pneg %p60
        %p244 = pneg %p84
        %p245 = pneg %p81
        %p246 = pneg %p105
        %p247 = pneg %p102
        %p248 = pneg %p126
        %p249 = pneg %p123
        %p250 = pneg %p147
        %p251 = pneg %p144
        %p252 = pneg %p173
        %p253 = pneg %p170
        %s254 = sand.u32 %s160, 1
        %s255 = scalar_lea.sflag [#allocation3], %s254
        %s256 = sand.u32 %s160, 1
        %s257 = scalar_lea.vmem [#allocation5], %s256
        %p258 = scmp.lt.s32.totalorder %s21, 1
        %s259 = scalar_select %p258, %s21, 1
        %s260 = smul.addr %s259, 25
        %s261 = smul.addr %s260, 4
        %s262 = scalar_lea.vmem %s1, %s261
        %v264 = vld [vmem:[%s262] sm:$0xf]
        %v265 = vld [vmem:[%s262 + $0x4] sm:$0xf]
        %v266 = vld [vmem:[%s262 + $0x8] sm:$0xf]
        %v267 = vld [vmem:[%s262 + $0xc] sm:$0xf]
        %v268 = vld [vmem:[%s262 + $0x10] sm:$0xf]
        %v269 = vld [vmem:[%s262 + $0x14] sm:$0xf]
        %v270 = vld [vmem:[%s262 + $0x18] sm:$0xf]
        %v271 = vld [vmem:[%s262 + $0x1c] sm:$0xf]
        %v272 = vld [vmem:[%s262 + $0x20] sm:$0xf]
        %v273 = vld [vmem:[%s262 + $0x24] sm:$0xf]
        %v274 = vld [vmem:[%s262 + $0x28] sm:$0xf]
        %v275 = vld [vmem:[%s262 + $0x2c] sm:$0xf]
        %v276 = vld [vmem:[%s262 + $0x30] sm:$0xf]
        %v277 = vld [vmem:[%s262 + $0x34] sm:$0xf]
        %v278 = vld [vmem:[%s262 + $0x38] sm:$0xf]
        %v279 = vld [vmem:[%s262 + $0x3c] sm:$0xf]
        %v280 = vld [vmem:[%s262 + $0x40] sm:$0xf]
        %v281 = vld [vmem:[%s262 + $0x44] sm:$0xf]
        %v282 = vld [vmem:[%s262 + $0x48] sm:$0xf]
        %v283 = vld [vmem:[%s262 + $0x4c] sm:$0xf]
        %v284 = vld [vmem:[%s262 + $0x50] sm:$0xf]
        %v285 = vld [vmem:[%s262 + $0x54] sm:$0xf]
        %v286 = vld [vmem:[%s262 + $0x58] sm:$0xf]
        %v287 = vld [vmem:[%s262 + $0x5c] sm:$0xf]
        %v288 = vld [vmem:[%s262 + $0x60] sm:$0x3]
        %v289 = vld [vmem:[%s0] sm:$0xf]
        %291 = vst [vmem:[#allocation1] ss:$4 sm:$0xff] %v289
        %v292 = vld.sshfl [vmem:[#allocation1] sm:$0xff pattern:$0x73625140]
        %v293 = vld.sshfl [vmem:[#allocation1 + $0x8] sm:$0xff pattern:$0x73625140]
        %v320 = vunpack.c.l.b16 %v264
        %v321 = vunpack.c.l.b16 %v265
        %v322 = vunpack.c.l.b16 %v266
        %v323 = vunpack.c.l.b16 %v267
        %v324 = vunpack.c.l.b16 %v268
        %v325 = vunpack.c.l.b16 %v269
        %v326 = vunpack.c.l.b16 %v270
        %v327 = vunpack.c.l.b16 %v271
        %v328 = vunpack.c.l.b16 %v272
        %v329 = vunpack.c.l.b16 %v273
        %v330 = vunpack.c.l.b16 %v274
        %v331 = vunpack.c.l.b16 %v275
        %v332 = vunpack.c.l.b16 %v276
        %v333 = vunpack.c.l.b16 %v277
        %v334 = vunpack.c.l.b16 %v278
        %v335 = vunpack.c.l.b16 %v279
        %v336 = vunpack.c.l.b16 %v280
        %v337 = vunpack.c.l.b16 %v281
        %v338 = vunpack.c.l.b16 %v282
        %v339 = vunpack.c.l.b16 %v283
        %v340 = vunpack.c.l.b16 %v284
        %v341 = vunpack.c.l.b16 %v285
        %v342 = vunpack.c.l.b16 %v286
        %v343 = vunpack.c.l.b16 %v287
        %v344 = vunpack.c.l.b16 %v288
        %v345 = vpack.c.b16 %v321, %v320
        %v346 = vpack.c.b16 %v323, %v322
        %v347 = vpack.c.b16 %v325, %v324
        %v348 = vpack.c.b16 %v327, %v326
        %v349 = vpack.c.b16 %v329, %v328
        %v350 = vpack.c.b16 %v331, %v330
        %v351 = vpack.c.b16 %v333, %v332
        %v352 = vpack.c.b16 %v335, %v334
        %v353 = vpack.c.b16 %v337, %v336
        %v354 = vpack.c.b16 %v339, %v338
        %v355 = vpack.c.b16 %v341, %v340
        %v356 = vpack.c.b16 %v343, %v342
        %v357 = vpack.c.b16 %v344, %v344
        %vm370 = vcmask 556032
        %v371 = vsel %vm370, %v293, 0
        %vm373 = vcmask 1041408
        %v375 = vsel %vm373, %v357, 0
        %377 = vmatpush.bf16.msra.mxu0 %v352
        %378 = vmatpush.bf16.msra.mxu0 %v351
        %379 = vmatpush.bf16.msra.mxu0 %v350
        %380 = vmatpush.bf16.msra.mxu0 %v349
        %381 = vmatpush.bf16.msra.mxu0 %v348
        %382 = vmatpush.bf16.msra.mxu0 %v347
        %383 = vmatpush.bf16.msra.mxu0 %v346
        %384 = vmatpush.bf16.msra.mxu0 %v345
        %385 = vmatmul.bf16.gmra.mxu0 %v292
        %v386 = vpop.f32.mrf.mxu0
        %v387 = vadd.f32 0.0, %v386
        %v388 = vpop.f32.mrf.mxu0
        %389 = vdwg.mxu0
        %390 = vmatpush.bf16.msra.mxu0 0
        %391 = vmatpush.bf16.msra.mxu0 0
        %392 = vmatpush.bf16.msra.mxu0 0
        %393 = vmatpush.bf16.msra.mxu0 %v375
        %394 = vmatpush.bf16.msra.mxu0 %v356
        %395 = vmatpush.bf16.msra.mxu0 %v355
        %396 = vmatpush.bf16.msra.mxu0 %v354
        %397 = vmatpush.bf16.msra.mxu0 %v353
        %398 = vmatmul.bf16.gmra.mxu0 %v371
        %v399 = vpop.f32.mrf.mxu0
        %v400 = vadd.f32 %v387, %v399
        %v401 = vpop.f32.mrf.mxu0
        %402 = vdwg.mxu0
        %v403 = vmul.f32 %v400, 0.020408163
        %v404 = vmul.f32 %v403, %v403
        %vm405 = vcmask 1043456
        %v406 = vsel %vm405, %v404, 0.0
        %407 = vadd.xlane.f32.xlu0 %v406
        %v408 = vpop.xlane.xlu0 %407
        %v409 = vadd.f32 %v408, 1e-12
        %v410 = vrsqrt.pop %v409
        %v411 = vmul.f32 %v410, %v409
        %v412 = vmul.f32 %v411, %v410
        %v413 = vmul.f32 0.5, %v412
        %v414 = vsub.f32 1.5, %v413
        %v415 = vmul.f32 %v410, %v414
        %vm416 = vweird.f32 %v409
        %vm417 = vweird.f32 %v410
        %vm418 = vmor %vm416, %vm417
        %v419 = vsel %vm418, %v410, %v415
        %v420 = vmul.f32 %v403, %v419
        %v421 = vld [vmem:[%s2] sm:$0x3]
        %422 = vmatpush.xpose.msra.mxu0 0.0
        %423 = vmatpush.xpose.msra.mxu0 0.0
        %424 = vmatpush.xpose.msra.mxu0 0.0
        %425 = vmatpush.xpose.msra.mxu0 0.0
        %426 = vmatpush.xpose.msra.mxu0 0.0
        %427 = vmatpush.xpose.msra.mxu0 0.0
        %428 = vmatpush.xpose.msra.mxu0 0.0
        %429 = vmatpush.xpose.msra.mxu0 0.0
        %430 = vmatpush.xpose.msra.mxu0 0.0
        %431 = vmatpush.xpose.msra.mxu0 0.0
        %432 = vmatpush.xpose.msra.mxu0 0.0
        %433 = vmatpush.xpose.msra.mxu0 0.0
        %434 = vmatpush.xpose.msra.mxu0 0.0
        %435 = vmatpush.xpose.msra.mxu0 0.0
        %436 = vmatpush.xpose.msra.mxu0 0.0
        %437 = vmatpush.xpose.msra.mxu0 %v403
        %438 = vmatmul.f32.gmra.mxu0 %v421
        %v439 = vpop.f32.mrf.mxu0
        %v440 = vadd.f32 0.0, %v439
        %441 = vdwg.mxu0
        %s442 = sld [smem:[#allocation2]]
        %v443 = vstv %s442
        %v444 = vadd.f32 %v440, %v443
        %s445 = sld [smem:[#allocation2 + $0x1]]
        %v446 = vstv %s445
        %v447 = vadd.f32 %v440, %v446
        %v449 = vrot.slane %v447, 1
        %v451 = vmax.f32 %v444, %v449
        %v452 = vsub.f32 %v444, %v451
        %v453 = vmul.f32 %v452, 1.442695
        %v454 = vpow.pop %v453
        %v456 = vrot.slane %v451, 7
        %v458 = vsub.f32 %v447, %v456
        %v459 = vmul.f32 %v458, 1.442695
        %v460 = vpow.pop %v459
        %v462 = vrot.slane %v460, 1
        %v464 = vadd.f32 %v454, %v462
        %v466 = vrot.slane %v464, 7
        %v468 = vrcp.pop %v466
        %v469 = vmul.f32 %v466, %v468
        %v470 = vsub.f32 1.0, %v469
        %v471 = vmul.f32 %v468, %v470
        %v472 = vadd.f32 %v468, %v471
        %vm473 = vweird.f32 %v466
        %vm474 = vweird.f32 %v468
        %vm475 = vmor %vm473, %vm474
        %v476 = vsel %vm475, %v468, %v472
        %v477 = vand.u32 2147483647, %v466
        %vm478 = vcmp.eq.f32.partialorder %v477, 8.507059e+37
        %v479 = vand.u32 %v466, 2147483648
        %v480 = vor.u32 1.1754944e-38, %v479
        %v481 = vsel %vm478, %v480, %v476
        %v482 = vmul.f32 %v460, %v481
        %v483 = vlaneseq
        %v484 = vand.u32 %v483, 127
        %vm485 = vcmask 25601
        %v486 = vsel %vm485, %v482, -inf
        %487 = vmax.xlane.f32.xlu0 %v486
        %v488 = vpop.xlane.xlu0 %487
        %vm489 = vcmp.eq.f32.partialorder %v482, %v488
        %v490 = vsel %vm489, %v484, 4
        %v491 = vsel %vm485, %v490, 2147483647
        %v492 = vand.u32 %v491, 65535
        %v493 = vshra.s32 %v491, 16
        %v494 = vcvt.s32.f32 %v492
        %v495 = vcvt.s32.f32 %v493
        %496 = vmin.xlane.f32.xlu0 %v495
        %v497 = vpop.xlane.xlu0 %496
        %vm498 = vcmp.eq.f32.partialorder %v495, %v497
        %v499 = vsel %vm498, %v494, inf
        %500 = vmin.xlane.f32.xlu0 %v499
        %v501 = vpop.xlane.xlu0 %500
        %v502 = vcvt.f32.s32 %v501
        %v503 = vcvt.f32.s32 %v497
        %v504 = vshll.u32 %v503, 16
        %v505 = vadd.s32 %v504, %v502
        %vm506 = vcmp.eq.s32.totalorder %v484, %v505
        %v507 = vsel %vm506, 1, 0
        %v508 = vcvt.s32.f32 %v507
        %v510 = vrot.slane %v508, 1
        %vm511 = vcmask 31744
        %v512 = vsel %vm511, %v510, 0
        %v515 = vsel %vm405, %v420, 0
        %517 = vmatpush.msra.mxu0 0.0
        %518 = vmatpush.msra.mxu0 0.0
        %519 = vmatpush.msra.mxu0 0.0
        %520 = vmatpush.msra.mxu0 0.0
        %521 = vmatpush.msra.mxu0 0.0
        %522 = vmatpush.msra.mxu0 0.0
        %523 = vmatpush.msra.mxu0 0.0
        %524 = vmatpush.msra.mxu0 0.0
        %525 = vmatpush.msra.mxu0 0.0
        %526 = vmatpush.msra.mxu0 0.0
        %527 = vmatpush.msra.mxu0 0.0
        %528 = vmatpush.msra.mxu0 0.0
        %529 = vmatpush.msra.mxu0 0.0
        %530 = vmatpush.msra.mxu0 0.0
        %531 = vmatpush.msra.mxu0 0.0
        %532 = vmatpush.msra.mxu0 %v515
        %533 = vmatmul.f32.gmra.mxu0 %v512
        %v534 = vpop.f32.mrf.mxu0
        %v535 = vadd.f32 0.0, %v534
        %536 = vdwg.mxu0
        %537 = vmatpush.xpose.msra.mxu0 0.0
        %538 = vmatpush.xpose.msra.mxu0 0.0
        %539 = vmatpush.xpose.msra.mxu0 0.0
        %540 = vmatpush.xpose.msra.mxu0 0.0
        %541 = vmatpush.xpose.msra.mxu0 0.0
        %542 = vmatpush.xpose.msra.mxu0 0.0
        %543 = vmatpush.xpose.msra.mxu0 0.0
        %544 = vmatpush.xpose.msra.mxu0 0.0
        %545 = vmatpush.xpose.msra.mxu0 0.0
        %546 = vmatpush.xpose.msra.mxu0 0.0
        %547 = vmatpush.xpose.msra.mxu0 0.0
        %548 = vmatpush.xpose.msra.mxu0 0.0
        %549 = vmatpush.xpose.msra.mxu0 0.0
        %550 = vmatpush.xpose.msra.mxu0 0.0
        %551 = vmatpush.xpose.msra.mxu0 0.0
        %552 = vmatpush.xpose.msra.mxu0 %v420
        %553 = vmatmul.f32.gmra.mxu0 %v535
        %v554 = vpop.f32.mrf.mxu0
        %v555 = vadd.f32 0.0, %v554
        %556 = vdwg.mxu0
        %vm557 = vcmask 24576
        %v558 = vsel %vm557, %v555, -inf
        %559 = vmax.xlane.f32.xlu0 %v558
        %v560 = vpop.xlane.xlu0 %559
        %v561 = vsub.f32 %v555, %v560
        %v562 = vmul.f32 %v561, 1.442695
        %v563 = vpow.pop %v562
        %v564 = vsel %vm557, %v563, 0.0
        %565 = vadd.xlane.f32.xlu0 %v564
        %v566 = vpop.xlane.xlu0 %565
        %v567 = vrcp.pop %v566
        %v568 = vmul.f32 %v566, %v567
        %v569 = vsub.f32 1.0, %v568
        %v570 = vmul.f32 %v567, %v569
        %v571 = vadd.f32 %v567, %v570
        %vm572 = vweird.f32 %v566
        %vm573 = vweird.f32 %v567
        %vm574 = vmor %vm572, %vm573
        %v575 = vsel %vm574, %v567, %v571
        %v576 = vand.u32 2147483647, %v566
        %vm577 = vcmp.eq.f32.partialorder %v576, 8.507059e+37
        %v578 = vand.u32 %v566, 2147483648
        %v579 = vor.u32 1.1754944e-38, %v578
        %v580 = vsel %vm577, %v579, %v575
        %v581 = vmul.f32 %v563, %v580
        %v583 = vrot.slane %v482, 1
        %v585 = vmul.f32 %v581, %v583
        %v586 = vsel %vm557, %v585, 0.0
        %587 = vadd.xlane.f32.xlu0 %v586
        %v588 = vpop.xlane.xlu0 %587
        %v589 = vrcp.pop %v588
        %v590 = vmul.f32 %v588, %v589
        %v591 = vsub.f32 1.0, %v590
        %v592 = vmul.f32 %v589, %v591
        %v593 = vadd.f32 %v589, %v592
        %vm594 = vweird.f32 %v588
        %vm595 = vweird.f32 %v589
        %vm596 = vmor %vm594, %vm595
        %v597 = vsel %vm596, %v589, %v593
        %v598 = vand.u32 2147483647, %v588
        %vm599 = vcmp.eq.f32.partialorder %v598, 8.507059e+37
        %v600 = vand.u32 %v588, 2147483648
        %v601 = vor.u32 1.1754944e-38, %v600
        %v602 = vsel %vm599, %v601, %v597
        %v603 = vmul.f32 %v585, %v602
        %v605 = vsel %vm511, %v603, 0
        %v608 = vsel %vm405, %v403, 0
        %610 = vmatpush.msra.mxu0 0.0
        %611 = vmatpush.msra.mxu0 0.0
        %612 = vmatpush.msra.mxu0 0.0
        %613 = vmatpush.msra.mxu0 0.0
        %614 = vmatpush.msra.mxu0 0.0
        %615 = vmatpush.msra.mxu0 0.0
        %616 = vmatpush.msra.mxu0 0.0
        %617 = vmatpush.msra.mxu0 0.0
        %618 = vmatpush.msra.mxu0 0.0
        %619 = vmatpush.msra.mxu0 0.0
        %620 = vmatpush.msra.mxu0 0.0
        %621 = vmatpush.msra.mxu0 0.0
        %622 = vmatpush.msra.mxu0 0.0
        %623 = vmatpush.msra.mxu0 0.0
        %624 = vmatpush.msra.mxu0 0.0
        %625 = vmatpush.msra.mxu0 %v608
        %626 = vmatmul.f32.gmra.mxu0 %v605
        %v627 = vpop.f32.mrf.mxu0
        %v628 = vadd.f32 0.0, %v627
        %629 = vdwg.mxu0
        %v630 = vld [vmem:[%s4] sm:$0x3]
        %v631 = vld [vmem:[%s5] sm:$0x1]
        %632 = vmatpush.xpose.msra.mxu0 0.0
        %633 = vmatpush.xpose.msra.mxu0 0.0
        %634 = vmatpush.xpose.msra.mxu0 0.0
        %635 = vmatpush.xpose.msra.mxu0 0.0
        %636 = vmatpush.xpose.msra.mxu0 0.0
        %637 = vmatpush.xpose.msra.mxu0 0.0
        %638 = vmatpush.xpose.msra.mxu0 0.0
        %639 = vmatpush.xpose.msra.mxu0 0.0
        %640 = vmatpush.xpose.msra.mxu0 0.0
        %641 = vmatpush.xpose.msra.mxu0 0.0
        %642 = vmatpush.xpose.msra.mxu0 0.0
        %643 = vmatpush.xpose.msra.mxu0 0.0
        %644 = vmatpush.xpose.msra.mxu0 0.0
        %645 = vmatpush.xpose.msra.mxu0 0.0
        %646 = vmatpush.xpose.msra.mxu0 0.0
        %647 = vmatpush.xpose.msra.mxu0 %v630
        %648 = vmatmul.f32.gmra.mxu0 %v628
        %v649 = vpop.f32.mrf.mxu0
        %v650 = vadd.f32 %v631, %v649
        %651 = vdwg.mxu0
        %vm652 = vcmask 8192
        %653 = vst.msk [vmem:[%s257] sm:$0x1] %vm652, %v650
        %s654 = sand.u32 %s160, 1
        %s655 = scalar_lea.sflag [#allocation3], %s654
        %s656 = sand.u32 %s160, 1
        %s657 = scalar_lea.vmem [#allocation5], %s656
        // Predicated region
        $region49: #{swin_breast_cancer_forward.3} parent=43 // pred_check
          %p658 = pneg %p170
        $region50: #{swin_breast_cancer_forward.3} parent=43 // pred_check_branch
          %660 = sbr.rel (%p658) target = $region52
        $region51: #{swin_breast_cancer_forward.3} parent=43 // pred_region
          %662 = vsyncadd %s655, 0
          %s663 = scalar_lea.hbm %s6, %s21
          %s665 = sshll.u32 %s657, 4
          %s666 = int_to_ptr.vmem [resolvable:$true] %s665
          %s667 = sshll.u32 %s663, 4
          %s668 = int_to_ptr.hbm [resolvable:$true] %s667
          %670 = dma.vmem_to_hbm [thread:$0]  %s666, 16, %s668, %s655
        $region52: #{swin_breast_cancer_forward.3} parent=43 // pred_fallthru
          _
      $region44: #{swin_breast_cancer_forward.3} parent=5 // pred_fallthru
        _
      %p671 = scmp.le.s32.totalorder 2, %s16
      // Predicated region
      $region53: #{swin_breast_cancer_forward.3} parent=5 // pred_check
        %p672 = pneg %p671
      $region54: #{swin_breast_cancer_forward.3} parent=5 // pred_check_branch
        %674 = sbr.rel (%p672) target = $region56
      $region55: #{swin_breast_cancer_forward.3} parent=5 // pred_region
        %s675 = ssub.s32 %s16, 2
        // Predicated region
        $region57: #{swin_breast_cancer_forward.3} parent=55 // pred_check
          %p676 = pneg %p176
        $region58: #{swin_breast_cancer_forward.3} parent=55 // pred_check_branch
          %678 = sbr.rel (%p676) target = $region60
        $region59: #{swin_breast_cancer_forward.3} parent=55 // pred_region
          %s679 = sand.u32 %s161, 1
          %s680 = scalar_lea.sflag [#allocation3], %s679
          %s681 = sand.u32 %s161, 1
          %s682 = scalar_lea.vmem [#allocation5], %s681
          %684 = dma.done %s680, 16
        $region60: #{swin_breast_cancer_forward.3} parent=55 // pred_fallthru
          _
      $region56: #{swin_breast_cancer_forward.3} parent=5 // pred_fallthru
        _
    $region6: #{swin_breast_cancer_forward.3} parent=1 // loop_footer
      %s20 = sadd.s32 1, %s16
    $region7: #{swin_breast_cancer_forward.3} parent=1 // loop_footer_branch
      %15 = sbr.rel target = $region3
    $region8: #{swin_breast_cancer_forward.3} parent=1 // loop_exit
      _
    %685 = vsyncpa [#allocation3], 1
    %s686 = scalar_lea.sflag [#allocation3], 1
    %687 = vsyncpa %s686, 1
    %688 = vsyncpa [#allocation4], 1
    %s689 = scalar_lea.sflag [#allocation4], 1
    %690 = vsyncpa %s689, 1

</llo_original>
